<compile_context>
chip_gen: v6e
topology: v6e:2x2x1
jax: 0.10.0
libtpu: 0.0.40
codegen_flags: <defaults>
</compile_context>

<pallas_src>
import functools
import math

import jax
import jax.numpy as jnp
from jax.experimental import pallas as pl
from jax.experimental.pallas import tpu as pltpu


def _round_up(x, m):
    return ((x + m - 1) // m) * m


def _soft_quantize_kernel(logits_ref, embed_ref, z_ref, ent_ref, *,
                          temperature, log_n, mxu_dtype):
    """One batch tile.

    logits_ref: [TB, N]   embed_ref: [N, D] (resident)
    z_ref:      [TB, D]   ent_ref:   [TB, 1] (per-row entropy partials)
    """
    x = logits_ref[...].astype(jnp.float32)                  # [TB, N]

    # --- shared softmax front-end (numerically stable) ------------------------------
    m = jnp.max(x, axis=1, keepdims=True)                    # [TB, 1]   (XLU)
    xm = x - m                                                # [TB, N]   (VPU)
    e = jnp.exp(xm)                                           # [TB, N]   (EUP)
    s = jnp.sum(e, axis=1, keepdims=True)                     # [TB, 1]   (XLU)

    # --- per-row entropy, no wide log --------------------------------------------
    #   sum_n p*log(p*N) = (1/s) * sum_n e*(x-m) - log(s) + log(N)
    inv_s = pl.reciprocal(s, approx=False)                    # exact, [TB,1] only
    ent_rows = (jnp.sum(e * xm, axis=1, keepdims=True) * inv_s
                - jnp.log(s) + log_n)                         # [TB, 1]
    ent_ref[...] = ent_rows

    # --- softmax(logits / T): reuse row max (max(x/T) = max(x)/T for T > 0) --------
    if temperature == 1.0:                                    # static Python branch
        et, st = e, s
    else:
        inv_t = 1.0 / float(temperature)
        et = jnp.exp(xm * inv_t)                              # [TB, N]
        st = jnp.sum(et, axis=1, keepdims=True)               # [TB, 1]

    # --- z = (exp-logits @ W) * (1/rowsum): normalize on [TB, D], not [TB, N] -------
    w = embed_ref[...]                                        # already mxu_dtype
    z_un = jnp.dot(et.astype(mxu_dtype), w,
                   preferred_element_type=jnp.float32)        # [TB, D] MXU, f32 acc
    approx = (mxu_dtype != jnp.float32)                       # exact recip on f32 path
    z = z_un * pl.reciprocal(st, approx=approx)
    z_ref[...] = z.astype(z_ref.dtype)


def soft_quantize(logits, embed_weight, temperature=1.0, *,
                  block_rows=512, mxu_dtype=jnp.bfloat16, out_dtype=None):
    """logits: [B, n_embed], embed_weight: [n_embed, D] -> (z [B, D], entropy scalar).

    mxu_dtype=jnp.bfloat16 is the production path (f32 accumulation).  mxu_dtype=
    jnp.float32 is slower (multi-pass MXU, 2x weight DMA/VMEM) and only closer —
    not bit-identical — to an f32 reference.
    """
    assert temperature > 0.0, "reused-row-max softmax rewrite requires temperature > 0"
    B, N = logits.shape
    N2, D = embed_weight.shape
    assert N == N2, "logits codebook dim must match embedding rows"
    out_dtype = logits.dtype if out_dtype is None else out_dtype

    # batch tile: multiple of 8 sublanes, default 512 (multiple of 256 -> full MXU
    # fill on v6e/v7x), bounded by the (padded) batch for small inputs.
    tb = _round_up(min(block_rows, _round_up(B, 8)), 8)
    b_pad = _round_up(B, tb)
    logits_p = jnp.pad(logits, ((0, b_pad - B), (0, 0))) if b_pad != B else logits
    w = embed_weight.astype(mxu_dtype)                        # cast once in the wrapper

    kernel = functools.partial(
        _soft_quantize_kernel,
        temperature=float(temperature), log_n=math.log(float(N)), mxu_dtype=mxu_dtype)

    z_pad, ent_rows = pl.pallas_call(
        kernel,
        out_shape=(
            jax.ShapeDtypeStruct((b_pad, D), out_dtype),
            jax.ShapeDtypeStruct((b_pad, 1), jnp.float32),
        ),
        grid=(b_pad // tb,),
        in_specs=[
            pl.BlockSpec((tb, N), lambda i: (i, 0)),          # logits tile (streamed)
            pl.BlockSpec((N, D), lambda i: (0, 0)),           # embedding weight (resident)
        ],
        out_specs=(
            pl.BlockSpec((tb, D), lambda i: (i, 0)),          # z tile (lane-dense, D >= 128)
            pl.BlockSpec((tb, 1), lambda i: (i, 0)),          # per-row entropy partials
        ),
        # Every grid step writes disjoint output blocks -> true "parallel" axis
        # (v7x can shard the batch across its two TensorCores).
        compiler_params=pltpu.CompilerParams(
            dimension_semantics=("parallel",)),
    )(logits_p, w)

    z = z_pad[:B] if b_pad != B else z_pad
    entropy = jnp.sum(ent_rows[:B, 0]) / B                    # finish mean in the wrapper
    return z, entropy


def soft_quantize_ref(logits, embed_weight, temperature=1.0):
    """Pure-JAX f32 reference mirroring the PyTorch forward."""
    x = logits.astype(jnp.float32)
    p = jax.nn.softmax(x, axis=1)
    entropy = jnp.mean(jnp.sum(p * jnp.log(p * x.shape[1] + 1e-10), axis=1))
    p2 = jax.nn.softmax(x / temperature, axis=1)
    z = jnp.einsum("bn,nd->bd", p2, embed_weight.astype(jnp.float32),
                   precision=jax.lax.Precision.HIGHEST)
    return z.astype(logits.dtype), entropy


if __name__ == "__main__":
    # Model's quantize stage: SoftQuantize(n_embed=512, embedding_dim=512); the
    # encoder reshapes [B, 1, 128, Y] -> [B*Y, 128] rows, so the batch here is B*Y.
    n_embed, embedding_dim = 512, 512
    batch = 200                                # B=2, Y=100 -> 200 rows (exercises padding)

    key = jax.random.PRNGKey(0)
    k_logits, k_embed = jax.random.split(key)
    embed_weight = jax.random.normal(k_embed, (n_embed, embedding_dim), dtype=jnp.float32)
    logits = jax.random.normal(k_logits, (batch, n_embed), dtype=jnp.float32)

    z_ref, ent_ref = soft_quantize_ref(logits, embed_weight, temperature=1.0)

    # Production path: bf16 MXU operands, f32 accumulation, single 208-row tile.
    z_bf, ent_bf = soft_quantize(logits, embed_weight, temperature=1.0)
    jax.block_until_ready((z_bf, ent_bf))
    assert z_bf.shape == (batch, embedding_dim)
    assert jnp.allclose(z_bf, z_ref, atol=5e-3, rtol=5e-2), "z (bf16 MXU path) mismatch"
    assert jnp.allclose(ent_bf, ent_ref, atol=1e-4, rtol=1e-4), "entropy mismatch"

    # Multi-tile path (grid of 2, padded tail rows, per-row entropy partials).
    z_mt, ent_mt = soft_quantize(logits, embed_weight, temperature=1.0, block_rows=128)
    jax.block_until_ready((z_mt, ent_mt))
    assert jnp.allclose(z_mt, z_ref, atol=5e-3, rtol=5e-2), "z (multi-tile) mismatch"
    assert jnp.allclose(ent_mt, ent_ref, atol=1e-4, rtol=1e-4), "entropy (multi-tile) mismatch"

    # f32 MXU path (slower; exact reciprocal, closer to the f32 reference).
    z_f32, ent_f32 = soft_quantize(logits, embed_weight, temperature=1.0,
                                   mxu_dtype=jnp.float32)
    jax.block_until_ready((z_f32, ent_f32))
    assert jnp.allclose(z_f32, z_ref, atol=2e-3, rtol=2e-2), "z (f32 MXU path) mismatch"
    assert jnp.allclose(ent_f32, ent_ref, atol=1e-4, rtol=1e-4), "entropy (f32 path) mismatch"

    # Non-unit temperature exercises the reused-max second-softmax branch.
    z_t, ent_t = soft_quantize(logits, embed_weight, temperature=0.7)
    z_tr, ent_tr = soft_quantize_ref(logits, embed_weight, temperature=0.7)
    jax.block_until_ready((z_t, ent_t))
    assert jnp.allclose(z_t, z_tr, atol=5e-3, rtol=5e-2), "z (T=0.7) mismatch"
    assert jnp.allclose(ent_t, ent_tr, atol=1e-4, rtol=1e-4), "entropy (T=0.7) mismatch"

    # bf16 logits in / bf16 z out (halves streamed bytes on the HBM-bound chips).
    logits_bf16 = logits.astype(jnp.bfloat16)
    z_b, ent_b = soft_quantize(logits_bf16, embed_weight, temperature=1.0)
    z_br, ent_br = soft_quantize_ref(logits_bf16, embed_weight, temperature=1.0)
    jax.block_until_ready((z_b, ent_b))
    assert z_b.dtype == jnp.bfloat16
    assert jnp.allclose(z_b.astype(jnp.float32), z_br.astype(jnp.float32),
                        atol=1e-2, rtol=1e-1), "z (bf16 I/O) mismatch"
    assert jnp.allclose(ent_b, ent_br, atol=2e-4, rtol=2e-4), "entropy (bf16 I/O) mismatch"

    print("KERNEL_OK")
</pallas_src>

<mosaic_0001>
module attributes {stable_mosaic.version = 11 : i64} {
  func.func @_soft_quantize_kernel(%arg0: i32, %arg1: memref<200x512xf32, #tpu.memory_space<vmem>>, %arg2: memref<512x512xbf16, #tpu.memory_space<vmem>>, %arg3: memref<200x512xf32, #tpu.memory_space<vmem>>, %arg4: memref<200x1xf32, #tpu.memory_space<vmem>>) attributes {dimension_semantics = [#tpu.dimension_semantics<parallel>], iteration_bounds = array<i64: 1>, scalar_prefetch = 0 : i64, scratch_operands = 0 : i64, tpu.core_type = #tpu.core_type<tc>, window_params = [{transform_indices = @transform_0, window_bounds = array<i64: 200, 512>}, {pipeline_mode = #tpu.pipeline_mode<synchronous>, transform_indices = @transform_1, window_bounds = array<i64: 512, 512>}, {transform_indices = @transform_2, window_bounds = array<i64: 200, 512>}, {transform_indices = @transform_3, window_bounds = array<i64: 200, 1>}]} {
    %c0 = arith.constant 0 : index
    %c0_0 = arith.constant 0 : index
    %0 = vector.load %arg1[%c0, %c0_0] : memref<200x512xf32, #tpu.memory_space<vmem>>, vector<200x512xf32>
    %cst = arith.constant dense<0xFF800000> : vector<200xf32>
    %1 = vector.multi_reduction <maximumf>, %0, %cst [1] : vector<200x512xf32> to vector<200xf32>
    %2 = vector.shape_cast %1 : vector<200xf32> to vector<200x1xf32>
    %3 = vector.broadcast %2 : vector<200x1xf32> to vector<200x512xf32>
    %4 = arith.subf %0, %3 : vector<200x512xf32>
    %5 = math.exp %4 : vector<200x512xf32>
    %cst_1 = arith.constant dense<0.000000e+00> : vector<200xf32>
    %6 = vector.multi_reduction <add>, %5, %cst_1 [1] : vector<200x512xf32> to vector<200xf32>
    %7 = vector.shape_cast %6 : vector<200xf32> to vector<200x1xf32>
    %8 = tpu.reciprocal %7 : vector<200x1xf32> -> vector<200x1xf32>
    %9 = arith.mulf %5, %4 : vector<200x512xf32>
    %cst_2 = arith.constant dense<0.000000e+00> : vector<200xf32>
    %10 = vector.multi_reduction <add>, %9, %cst_2 [1] : vector<200x512xf32> to vector<200xf32>
    %11 = vector.shape_cast %10 : vector<200xf32> to vector<200x1xf32>
    %12 = arith.mulf %11, %8 : vector<200x1xf32>
    %13 = math.log %7 : vector<200x1xf32>
    %14 = arith.subf %12, %13 : vector<200x1xf32>
    %cst_3 = arith.constant 6.23832464 : f32
    %15 = vector.broadcast %cst_3 : f32 to vector<200x1xf32>
    %16 = arith.addf %14, %15 : vector<200x1xf32>
    %c0_4 = arith.constant 0 : index
    %c0_5 = arith.constant 0 : index
    %17 = vector.load %arg4[%c0_4, %c0_5] : memref<200x1xf32, #tpu.memory_space<vmem>>, vector<200x1xf32>
    tpu.vector_store %arg4[%c0_4, %c0_5], %16 {strides = array<i32>} : memref<200x1xf32, #tpu.memory_space<vmem>>, vector<200x1xf32>,
    %c0_6 = arith.constant 0 : index
    %c0_7 = arith.constant 0 : index
    %18 = vector.load %arg2[%c0_6, %c0_7] : memref<512x512xbf16, #tpu.memory_space<vmem>>, vector<512x512xbf16>
    %19 = arith.truncf %5 : vector<200x512xf32> to vector<200x512xbf16>
    %cst_8 = arith.constant dense<0.000000e+00> : vector<200x512xf32>
    %20 = tpu.matmul %19, %18, %cst_8 {dimension_numbers = #tpu.dot_dimension_numbers<[1], [0], [0], [1], [0, 0, 1, 1], [], []>} : vector<200x512xbf16>, vector<512x512xbf16>, vector<200x512xf32> -> vector<200x512xf32>
    %21 = tpu.reciprocal %7 {approx = true} : vector<200x1xf32> -> vector<200x1xf32>
    %22 = vector.broadcast %21 : vector<200x1xf32> to vector<200x512xf32>
    %23 = arith.mulf %20, %22 : vector<200x512xf32>
    %c0_9 = arith.constant 0 : index
    %c0_10 = arith.constant 0 : index
    %24 = vector.load %arg3[%c0_9, %c0_10] : memref<200x512xf32, #tpu.memory_space<vmem>>, vector<200x512xf32>
    tpu.vector_store %arg3[%c0_9, %c0_10], %23 {strides = array<i32>} : memref<200x512xf32, #tpu.memory_space<vmem>>, vector<200x512xf32>,
    return
  }
  func.func @transform_0(%arg0: i32) -> (i32, i32) {
    %c0_i32 = arith.constant 0 : i32
    %c0_i32_0 = arith.constant 0 : i32
    return %arg0, %c0_i32 : i32, i32
  }
  func.func @transform_1(%arg0: i32) -> (i32, i32) {
    %c0_i32 = arith.constant 0 : i32
    %c0_i32_0 = arith.constant 0 : i32
    %c0_i32_1 = arith.constant 0 : i32
    return %c0_i32, %c0_i32_0 : i32, i32
  }
  func.func @transform_2(%arg0: i32) -> (i32, i32) {
    %c0_i32 = arith.constant 0 : i32
    %c0_i32_0 = arith.constant 0 : i32
    return %arg0, %c0_i32 : i32, i32
  }
  func.func @transform_3(%arg0: i32) -> (i32, i32) {
    %c0_i32 = arith.constant 0 : i32
    %c0_i32_0 = arith.constant 0 : i32
    return %arg0, %c0_i32 : i32, i32
  }
}

</mosaic_0001>

<llo_original>
// kernel: tpu_custom_call.1
$region0: #{tpu_custom_call.1}
  #allocation0 [shape = 'u32[]', space=smem, size = 0x4, offset = 0x4, fixed_abs, tag = 'smem constant byte address 0x4 - core index']
  #allocation1 [shape = 'u32[144,128]{1,0:T(1,128)}', space=vmem, size = 0x12000, scoped, tag = 'internal scratch']
  %s0 = inlined_call_operand.hbm [shape: f32[200,512], index: 0, kind: input, shape index: {}]
  %s1 = inlined_call_operand.hbm [shape: bf16[512,512], index: 1, kind: input, shape index: {}]
  %s2 = inlined_call_operand.hbm [shape: f32[200,512], index: 2, kind: output, shape index: {0}]
  %s3 = inlined_call_operand.vmem [shape: f32[200,1], index: 3, kind: output, shape index: {1}]
  %4 = xla_tuple %s2, %s3
  %s5 = sld [smem:[#allocation0]]
  $region34: #{tpu_custom_call.1} parent=0
    _
  %s7 = ssub.s32 1, %s5
  %s8 = scalar_select 0, %s7, %s5
  $region1: #{tpu_custom_call.1} parent=0
    #allocation2 [shape = 'u8[409600]{0}', space=vmem, size = 0x64000, scoped, tag = 'input window, operand 0, single buffered']
    #allocation3 [shape = 's32[1]{0}', space=sflag, size = 0x4, scoped, tag = 'scoped memory for tpu_custom_call.1']
    #allocation4 [shape = 's32[1]{0}', space=sflag, size = 0x4, scoped, tag = 'scoped memory for tpu_custom_call.1']
    #allocation5 [shape = 'u8[524288]{0}', space=vmem, size = 0x80000, scoped, tag = 'input window, operand 1, single buffered']
    #allocation6 [shape = 's32[1]{0}', space=sflag, size = 0x4, scoped, tag = 'scoped memory for tpu_custom_call.1']
    #allocation7 [shape = 'u8[409600]{0}', space=vmem, size = 0x64000, scoped, tag = 'output window, operand 0, single buffered']
    %9 = vsyncpa [#allocation3], 0
    %10 = vsyncpa [#allocation6], 0
    %11 = vsyncpa [#allocation4], 0
    // Predicated region
    $region2: #{tpu_custom_call.1} parent=1 // pred_check
      _
    $region3: #{tpu_custom_call.1} parent=1 // pred_check_branch
      %13 = sbr.rel (0) target = $region5
    $region4: #{tpu_custom_call.1} parent=1 // pred_region
      %s15 = ssub.s32 12800, 12800
      %16 = vsyncadd [#allocation3], %s15
      %s17 = sshll.u32 [#allocation2], 4
      %s18 = int_to_ptr.vmem [resolvable:$true] %s17
      %23 = dma.hbm_to_vmem [thread:$0]  %s0, 12800, %s18, [#allocation3], 512, 512, 32
    $region5: #{tpu_custom_call.1} parent=1 // pred_fallthru
      _
    // Predicated region
    $region6: #{tpu_custom_call.1} parent=1 // pred_check
      _
    $region7: #{tpu_custom_call.1} parent=1 // pred_check_branch
      %25 = sbr.rel (0) target = $region9
    $region8: #{tpu_custom_call.1} parent=1 // pred_region
      %s27 = ssub.s32 16384, 16384
      %28 = vsyncadd [#allocation6], %s27
      %s29 = sshll.u32 [#allocation5], 4
      %s30 = int_to_ptr.vmem [resolvable:$true] %s29
      %35 = dma.hbm_to_vmem [thread:$0]  %s1, 16384, %s30, [#allocation6], 256, 256, 16
    $region9: #{tpu_custom_call.1} parent=1 // pred_fallthru
      _
    // Predicated region
    $region10: #{tpu_custom_call.1} parent=1 // pred_check
      _
    $region11: #{tpu_custom_call.1} parent=1 // pred_check_branch
      %37 = sbr.rel (0) target = $region13
    $region12: #{tpu_custom_call.1} parent=1 // pred_region
      %38 = dma.done [#allocation3], 12800
    $region13: #{tpu_custom_call.1} parent=1 // pred_fallthru
      _
    // Predicated region
    $region14: #{tpu_custom_call.1} parent=1 // pred_check
      _
    $region15: #{tpu_custom_call.1} parent=1 // pred_check_branch
      %40 = sbr.rel (0) target = $region17
    $region16: #{tpu_custom_call.1} parent=1 // pred_region
      %41 = dma.done [#allocation6], 16384
    $region17: #{tpu_custom_call.1} parent=1 // pred_fallthru
      _
    %v42 = vld [vmem:[#allocation2] sm:$0xff]
    %v43 = vld [vmem:[#allocation2 + $0x8] sm:$0xff]
    %v44 = vld [vmem:[#allocation2 + $0x10] sm:$0xff]
    %v45 = vld [vmem:[#allocation2 + $0x18] sm:$0xff]
    %v46 = vld [vmem:[#allocation2 + $0x20] sm:$0xff]
    %v47 = vld [vmem:[#allocation2 + $0x28] sm:$0xff]
    %v48 = vld [vmem:[#allocation2 + $0x30] sm:$0xff]
    %v49 = vld [vmem:[#allocation2 + $0x38] sm:$0xff]
    %v50 = vld [vmem:[#allocation2 + $0x40] sm:$0xff]
    %v51 = vld [vmem:[#allocation2 + $0x48] sm:$0xff]
    %v52 = vld [vmem:[#allocation2 + $0x50] sm:$0xff]
    %v53 = vld [vmem:[#allocation2 + $0x58] sm:$0xff]
    %v54 = vld [vmem:[#allocation2 + $0x60] sm:$0xff]
    %v55 = vld [vmem:[#allocation2 + $0x68] sm:$0xff]
    %v56 = vld [vmem:[#allocation2 + $0x70] sm:$0xff]
    %v57 = vld [vmem:[#allocation2 + $0x78] sm:$0xff]
    %v58 = vld [vmem:[#allocation2 + $0x80] sm:$0xff]
    %v59 = vld [vmem:[#allocation2 + $0x88] sm:$0xff]
    %v60 = vld [vmem:[#allocation2 + $0x90] sm:$0xff]
    %v61 = vld [vmem:[#allocation2 + $0x98] sm:$0xff]
    %v62 = vld [vmem:[#allocation2 + $0xa0] sm:$0xff]
    %v63 = vld [vmem:[#allocation2 + $0xa8] sm:$0xff]
    %v64 = vld [vmem:[#allocation2 + $0xb0] sm:$0xff]
    %v65 = vld [vmem:[#allocation2 + $0xb8] sm:$0xff]
    %v66 = vld [vmem:[#allocation2 + $0xc0] sm:$0xff]
    %v67 = vld [vmem:[#allocation2 + $0xc8] sm:$0xff]
    %v68 = vld [vmem:[#allocation2 + $0xd0] sm:$0xff]
    %v69 = vld [vmem:[#allocation2 + $0xd8] sm:$0xff]
    %v70 = vld [vmem:[#allocation2 + $0xe0] sm:$0xff]
    %v71 = vld [vmem:[#allocation2 + $0xe8] sm:$0xff]
    %v72 = vld [vmem:[#allocation2 + $0xf0] sm:$0xff]
    %v73 = vld [vmem:[#allocation2 + $0xf8] sm:$0xff]
    %v74 = vld [vmem:[#allocation2 + $0x100] sm:$0xff]
    %v75 = vld [vmem:[#allocation2 + $0x108] sm:$0xff]
    %v76 = vld [vmem:[#allocation2 + $0x110] sm:$0xff]
    %v77 = vld [vmem:[#allocation2 + $0x118] sm:$0xff]
    %v78 = vld [vmem:[#allocation2 + $0x120] sm:$0xff]
    %v79 = vld [vmem:[#allocation2 + $0x128] sm:$0xff]
    %v80 = vld [vmem:[#allocation2 + $0x130] sm:$0xff]
    %v81 = vld [vmem:[#allocation2 + $0x138] sm:$0xff]
    %v82 = vld [vmem:[#allocation2 + $0x140] sm:$0xff]
    %v83 = vld [vmem:[#allocation2 + $0x148] sm:$0xff]
    %v84 = vld [vmem:[#allocation2 + $0x150] sm:$0xff]
    %v85 = vld [vmem:[#allocation2 + $0x158] sm:$0xff]
    %v86 = vld [vmem:[#allocation2 + $0x160] sm:$0xff]
    %v87 = vld [vmem:[#allocation2 + $0x168] sm:$0xff]
    %v88 = vld [vmem:[#allocation2 + $0x170] sm:$0xff]
    %v89 = vld [vmem:[#allocation2 + $0x178] sm:$0xff]
    %v90 = vld [vmem:[#allocation2 + $0x180] sm:$0xff]
    %v91 = vld [vmem:[#allocation2 + $0x188] sm:$0xff]
    %v92 = vld [vmem:[#allocation2 + $0x190] sm:$0xff]
    %v93 = vld [vmem:[#allocation2 + $0x198] sm:$0xff]
    %v94 = vld [vmem:[#allocation2 + $0x1a0] sm:$0xff]
    %v95 = vld [vmem:[#allocation2 + $0x1a8] sm:$0xff]
    %v96 = vld [vmem:[#allocation2 + $0x1b0] sm:$0xff]
    %v97 = vld [vmem:[#allocation2 + $0x1b8] sm:$0xff]
    %v98 = vld [vmem:[#allocation2 + $0x1c0] sm:$0xff]
    %v99 = vld [vmem:[#allocation2 + $0x1c8] sm:$0xff]
    %v100 = vld [vmem:[#allocation2 + $0x1d0] sm:$0xff]
    %v101 = vld [vmem:[#allocation2 + $0x1d8] sm:$0xff]
    %v102 = vld [vmem:[#allocation2 + $0x1e0] sm:$0xff]
    %v103 = vld [vmem:[#allocation2 + $0x1e8] sm:$0xff]
    %v104 = vld [vmem:[#allocation2 + $0x1f0] sm:$0xff]
    %v105 = vld [vmem:[#allocation2 + $0x1f8] sm:$0xff]
    %v106 = vld [vmem:[#allocation2 + $0x200] sm:$0xff]
    %v107 = vld [vmem:[#allocation2 + $0x208] sm:$0xff]
    %v108 = vld [vmem:[#allocation2 + $0x210] sm:$0xff]
    %v109 = vld [vmem:[#allocation2 + $0x218] sm:$0xff]
    %v110 = vld [vmem:[#allocation2 + $0x220] sm:$0xff]
    %v111 = vld [vmem:[#allocation2 + $0x228] sm:$0xff]
    %v112 = vld [vmem:[#allocation2 + $0x230] sm:$0xff]
    %v113 = vld [vmem:[#allocation2 + $0x238] sm:$0xff]
    %v114 = vld [vmem:[#allocation2 + $0x240] sm:$0xff]
    %v115 = vld [vmem:[#allocation2 + $0x248] sm:$0xff]
    %v116 = vld [vmem:[#allocation2 + $0x250] sm:$0xff]
    %v117 = vld [vmem:[#allocation2 + $0x258] sm:$0xff]
    %v118 = vld [vmem:[#allocation2 + $0x260] sm:$0xff]
    %v119 = vld [vmem:[#allocation2 + $0x268] sm:$0xff]
    %v120 = vld [vmem:[#allocation2 + $0x270] sm:$0xff]
    %v121 = vld [vmem:[#allocation2 + $0x278] sm:$0xff]
    %v122 = vld [vmem:[#allocation2 + $0x280] sm:$0xff]
    %v123 = vld [vmem:[#allocation2 + $0x288] sm:$0xff]
    %v124 = vld [vmem:[#allocation2 + $0x290] sm:$0xff]
    %v125 = vld [vmem:[#allocation2 + $0x298] sm:$0xff]
    %v126 = vld [vmem:[#allocation2 + $0x2a0] sm:$0xff]
    %v127 = vld [vmem:[#allocation2 + $0x2a8] sm:$0xff]
    %v128 = vld [vmem:[#allocation2 + $0x2b0] sm:$0xff]
    %v129 = vld [vmem:[#allocation2 + $0x2b8] sm:$0xff]
    %v130 = vld [vmem:[#allocation2 + $0x2c0] sm:$0xff]
    %v131 = vld [vmem:[#allocation2 + $0x2c8] sm:$0xff]
    %v132 = vld [vmem:[#allocation2 + $0x2d0] sm:$0xff]
    %v133 = vld [vmem:[#allocation2 + $0x2d8] sm:$0xff]
    %v134 = vld [vmem:[#allocation2 + $0x2e0] sm:$0xff]
    %v135 = vld [vmem:[#allocation2 + $0x2e8] sm:$0xff]
    %v136 = vld [vmem:[#allocation2 + $0x2f0] sm:$0xff]
    %v137 = vld [vmem:[#allocation2 + $0x2f8] sm:$0xff]
    %v138 = vld [vmem:[#allocation2 + $0x300] sm:$0xff]
    %v139 = vld [vmem:[#allocation2 + $0x308] sm:$0xff]
    %v140 = vld [vmem:[#allocation2 + $0x310] sm:$0xff]
    %v141 = vld [vmem:[#allocation2 + $0x318] sm:$0xff]
    %v142 = vmax.f32 %v42, %v43
    %v143 = vmax.f32 %v142, %v44
    %v144 = vmax.f32 %v143, %v45
    %145 = vmax.xlane.f32.xlu0 %v144
    %v146 = vpop.xlane.xlu0 %145
    %v147 = vmax.f32 %v46, %v47
    %v148 = vmax.f32 %v147, %v48
    %v149 = vmax.f32 %v148, %v49
    %150 = vmax.xlane.f32.xlu0 %v149
    %v151 = vpop.xlane.xlu0 %150
    %v152 = vmax.f32 %v50, %v51
    %v153 = vmax.f32 %v152, %v52
    %v154 = vmax.f32 %v153, %v53
    %155 = vmax.xlane.f32.xlu0 %v154
    %v156 = vpop.xlane.xlu0 %155
    %v157 = vmax.f32 %v54, %v55
    %v158 = vmax.f32 %v157, %v56
    %v159 = vmax.f32 %v158, %v57
    %160 = vmax.xlane.f32.xlu0 %v159
    %v161 = vpop.xlane.xlu0 %160
    %v162 = vmax.f32 %v58, %v59
    %v163 = vmax.f32 %v162, %v60
    %v164 = vmax.f32 %v163, %v61
    %165 = vmax.xlane.f32.xlu0 %v164
    %v166 = vpop.xlane.xlu0 %165
    %v167 = vmax.f32 %v62, %v63
    %v168 = vmax.f32 %v167, %v64
    %v169 = vmax.f32 %v168, %v65
    %170 = vmax.xlane.f32.xlu0 %v169
    %v171 = vpop.xlane.xlu0 %170
    %v172 = vmax.f32 %v66, %v67
    %v173 = vmax.f32 %v172, %v68
    %v174 = vmax.f32 %v173, %v69
    %175 = vmax.xlane.f32.xlu0 %v174
    %v176 = vpop.xlane.xlu0 %175
    %v177 = vmax.f32 %v70, %v71
    %v178 = vmax.f32 %v177, %v72
    %v179 = vmax.f32 %v178, %v73
    %180 = vmax.xlane.f32.xlu0 %v179
    %v181 = vpop.xlane.xlu0 %180
    %v182 = vmax.f32 %v74, %v75
    %v183 = vmax.f32 %v182, %v76
    %v184 = vmax.f32 %v183, %v77
    %185 = vmax.xlane.f32.xlu0 %v184
    %v186 = vpop.xlane.xlu0 %185
    %v187 = vmax.f32 %v78, %v79
    %v188 = vmax.f32 %v187, %v80
    %v189 = vmax.f32 %v188, %v81
    %190 = vmax.xlane.f32.xlu0 %v189
    %v191 = vpop.xlane.xlu0 %190
    %v192 = vmax.f32 %v82, %v83
    %v193 = vmax.f32 %v192, %v84
    %v194 = vmax.f32 %v193, %v85
    %195 = vmax.xlane.f32.xlu0 %v194
    %v196 = vpop.xlane.xlu0 %195
    %v197 = vmax.f32 %v86, %v87
    %v198 = vmax.f32 %v197, %v88
    %v199 = vmax.f32 %v198, %v89
    %200 = vmax.xlane.f32.xlu0 %v199
    %v201 = vpop.xlane.xlu0 %200
    %v202 = vmax.f32 %v90, %v91
    %v203 = vmax.f32 %v202, %v92
    %v204 = vmax.f32 %v203, %v93
    %205 = vmax.xlane.f32.xlu0 %v204
    %v206 = vpop.xlane.xlu0 %205
    %v207 = vmax.f32 %v94, %v95
    %v208 = vmax.f32 %v207, %v96
    %v209 = vmax.f32 %v208, %v97
    %210 = vmax.xlane.f32.xlu0 %v209
    %v211 = vpop.xlane.xlu0 %210
    %v212 = vmax.f32 %v98, %v99
    %v213 = vmax.f32 %v212, %v100
    %v214 = vmax.f32 %v213, %v101
    %215 = vmax.xlane.f32.xlu0 %v214
    %v216 = vpop.xlane.xlu0 %215
    %v217 = vmax.f32 %v102, %v103
    %v218 = vmax.f32 %v217, %v104
    %v219 = vmax.f32 %v218, %v105
    %220 = vmax.xlane.f32.xlu0 %v219
    %v221 = vpop.xlane.xlu0 %220
    %v222 = vmax.f32 %v106, %v107
    %v223 = vmax.f32 %v222, %v108
    %v224 = vmax.f32 %v223, %v109
    %225 = vmax.xlane.f32.xlu0 %v224
    %v226 = vpop.xlane.xlu0 %225
    %v227 = vmax.f32 %v110, %v111
    %v228 = vmax.f32 %v227, %v112
    %v229 = vmax.f32 %v228, %v113
    %230 = vmax.xlane.f32.xlu0 %v229
    %v231 = vpop.xlane.xlu0 %230
    %v232 = vmax.f32 %v114, %v115
    %v233 = vmax.f32 %v232, %v116
    %v234 = vmax.f32 %v233, %v117
    %235 = vmax.xlane.f32.xlu0 %v234
    %v236 = vpop.xlane.xlu0 %235
    %v237 = vmax.f32 %v118, %v119
    %v238 = vmax.f32 %v237, %v120
    %v239 = vmax.f32 %v238, %v121
    %240 = vmax.xlane.f32.xlu0 %v239
    %v241 = vpop.xlane.xlu0 %240
    %v242 = vmax.f32 %v122, %v123
    %v243 = vmax.f32 %v242, %v124
    %v244 = vmax.f32 %v243, %v125
    %245 = vmax.xlane.f32.xlu0 %v244
    %v246 = vpop.xlane.xlu0 %245
    %v247 = vmax.f32 %v126, %v127
    %v248 = vmax.f32 %v247, %v128
    %v249 = vmax.f32 %v248, %v129
    %250 = vmax.xlane.f32.xlu0 %v249
    %v251 = vpop.xlane.xlu0 %250
    %v252 = vmax.f32 %v130, %v131
    %v253 = vmax.f32 %v252, %v132
    %v254 = vmax.f32 %v253, %v133
    %255 = vmax.xlane.f32.xlu0 %v254
    %v256 = vpop.xlane.xlu0 %255
    %v257 = vmax.f32 %v134, %v135
    %v258 = vmax.f32 %v257, %v136
    %v259 = vmax.f32 %v258, %v137
    %260 = vmax.xlane.f32.xlu0 %v259
    %v261 = vpop.xlane.xlu0 %260
    %v262 = vmax.f32 %v138, %v139
    %v263 = vmax.f32 %v262, %v140
    %v264 = vmax.f32 %v263, %v141
    %265 = vmax.xlane.f32.xlu0 %v264
    %v266 = vpop.xlane.xlu0 %265
    %v267 = vsub.f32 %v42, %v146
    %v268 = vsub.f32 %v43, %v146
    %v269 = vsub.f32 %v44, %v146
    %v270 = vsub.f32 %v45, %v146
    %v271 = vsub.f32 %v46, %v151
    %v272 = vsub.f32 %v47, %v151
    %v273 = vsub.f32 %v48, %v151
    %v274 = vsub.f32 %v49, %v151
    %v275 = vsub.f32 %v50, %v156
    %v276 = vsub.f32 %v51, %v156
    %v277 = vsub.f32 %v52, %v156
    %v278 = vsub.f32 %v53, %v156
    %v279 = vsub.f32 %v54, %v161
    %v280 = vsub.f32 %v55, %v161
    %v281 = vsub.f32 %v56, %v161
    %v282 = vsub.f32 %v57, %v161
    %v283 = vsub.f32 %v58, %v166
    %v284 = vsub.f32 %v59, %v166
    %v285 = vsub.f32 %v60, %v166
    %v286 = vsub.f32 %v61, %v166
    %v287 = vsub.f32 %v62, %v171
    %v288 = vsub.f32 %v63, %v171
    %v289 = vsub.f32 %v64, %v171
    %v290 = vsub.f32 %v65, %v171
    %v291 = vsub.f32 %v66, %v176
    %v292 = vsub.f32 %v67, %v176
    %v293 = vsub.f32 %v68, %v176
    %v294 = vsub.f32 %v69, %v176
    %v295 = vsub.f32 %v70, %v181
    %v296 = vsub.f32 %v71, %v181
    %v297 = vsub.f32 %v72, %v181
    %v298 = vsub.f32 %v73, %v181
    %v299 = vsub.f32 %v74, %v186
    %v300 = vsub.f32 %v75, %v186
    %v301 = vsub.f32 %v76, %v186
    %v302 = vsub.f32 %v77, %v186
    %v303 = vsub.f32 %v78, %v191
    %v304 = vsub.f32 %v79, %v191
    %v305 = vsub.f32 %v80, %v191
    %v306 = vsub.f32 %v81, %v191
    %v307 = vsub.f32 %v82, %v196
    %v308 = vsub.f32 %v83, %v196
    %v309 = vsub.f32 %v84, %v196
    %v310 = vsub.f32 %v85, %v196
    %v311 = vsub.f32 %v86, %v201
    %v312 = vsub.f32 %v87, %v201
    %v313 = vsub.f32 %v88, %v201
    %v314 = vsub.f32 %v89, %v201
    %v315 = vsub.f32 %v90, %v206
    %v316 = vsub.f32 %v91, %v206
    %v317 = vsub.f32 %v92, %v206
    %v318 = vsub.f32 %v93, %v206
    %v319 = vsub.f32 %v94, %v211
    %v320 = vsub.f32 %v95, %v211
    %v321 = vsub.f32 %v96, %v211
    %v322 = vsub.f32 %v97, %v211
    %v323 = vsub.f32 %v98, %v216
    %v324 = vsub.f32 %v99, %v216
    %v325 = vsub.f32 %v100, %v216
    %v326 = vsub.f32 %v101, %v216
    %v327 = vsub.f32 %v102, %v221
    %v328 = vsub.f32 %v103, %v221
    %v329 = vsub.f32 %v104, %v221
    %v330 = vsub.f32 %v105, %v221
    %v331 = vsub.f32 %v106, %v226
    %v332 = vsub.f32 %v107, %v226
    %v333 = vsub.f32 %v108, %v226
    %v334 = vsub.f32 %v109, %v226
    %v335 = vsub.f32 %v110, %v231
    %v336 = vsub.f32 %v111, %v231
    %v337 = vsub.f32 %v112, %v231
    %v338 = vsub.f32 %v113, %v231
    %v339 = vsub.f32 %v114, %v236
    %v340 = vsub.f32 %v115, %v236
    %v341 = vsub.f32 %v116, %v236
    %v342 = vsub.f32 %v117, %v236
    %v343 = vsub.f32 %v118, %v241
    %v344 = vsub.f32 %v119, %v241
    %v345 = vsub.f32 %v120, %v241
    %v346 = vsub.f32 %v121, %v241
    %v347 = vsub.f32 %v122, %v246
    %v348 = vsub.f32 %v123, %v246
    %v349 = vsub.f32 %v124, %v246
    %v350 = vsub.f32 %v125, %v246
    %v351 = vsub.f32 %v126, %v251
    %v352 = vsub.f32 %v127, %v251
    %v353 = vsub.f32 %v128, %v251
    %v354 = vsub.f32 %v129, %v251
    %v355 = vsub.f32 %v130, %v256
    %v356 = vsub.f32 %v131, %v256
    %v357 = vsub.f32 %v132, %v256
    %v358 = vsub.f32 %v133, %v256
    %v359 = vsub.f32 %v134, %v261
    %v360 = vsub.f32 %v135, %v261
    %v361 = vsub.f32 %v136, %v261
    %v362 = vsub.f32 %v137, %v261
    %v363 = vsub.f32 %v138, %v266
    %v364 = vsub.f32 %v139, %v266
    %v365 = vsub.f32 %v140, %v266
    %v366 = vsub.f32 %v141, %v266
    %v367 = vmul.f32 %v267, 1.442695
    %v368 = vpow.pop %v367
    %v369 = vmul.f32 %v268, 1.442695
    %v370 = vpow.pop %v369
    %v371 = vmul.f32 %v269, 1.442695
    %v372 = vpow.pop %v371
    %v373 = vmul.f32 %v270, 1.442695
    %v374 = vpow.pop %v373
    %v375 = vmul.f32 %v271, 1.442695
    %v376 = vpow.pop %v375
    %v377 = vmul.f32 %v272, 1.442695
    %v378 = vpow.pop %v377
    %v379 = vmul.f32 %v273, 1.442695
    %v380 = vpow.pop %v379
    %v381 = vmul.f32 %v274, 1.442695
    %v382 = vpow.pop %v381
    %v383 = vmul.f32 %v275, 1.442695
    %v384 = vpow.pop %v383
    %v385 = vmul.f32 %v276, 1.442695
    %v386 = vpow.pop %v385
    %v387 = vmul.f32 %v277, 1.442695
    %v388 = vpow.pop %v387
    %v389 = vmul.f32 %v278, 1.442695
    %v390 = vpow.pop %v389
    %v391 = vmul.f32 %v279, 1.442695
    %v392 = vpow.pop %v391
    %v393 = vmul.f32 %v280, 1.442695
    %v394 = vpow.pop %v393
    %v395 = vmul.f32 %v281, 1.442695
    %v396 = vpow.pop %v395
    %v397 = vmul.f32 %v282, 1.442695
    %v398 = vpow.pop %v397
    %v399 = vmul.f32 %v283, 1.442695
    %v400 = vpow.pop %v399
    %v401 = vmul.f32 %v284, 1.442695
    %v402 = vpow.pop %v401
    %v403 = vmul.f32 %v285, 1.442695
    %v404 = vpow.pop %v403
    %v405 = vmul.f32 %v286, 1.442695
    %v406 = vpow.pop %v405
    %v407 = vmul.f32 %v287, 1.442695
    %v408 = vpow.pop %v407
    %v409 = vmul.f32 %v288, 1.442695
    %v410 = vpow.pop %v409
    %v411 = vmul.f32 %v289, 1.442695
    %v412 = vpow.pop %v411
    %v413 = vmul.f32 %v290, 1.442695
    %v414 = vpow.pop %v413
    %v415 = vmul.f32 %v291, 1.442695
    %v416 = vpow.pop %v415
    %v417 = vmul.f32 %v292, 1.442695
    %v418 = vpow.pop %v417
    %v419 = vmul.f32 %v293, 1.442695
    %v420 = vpow.pop %v419
    %v421 = vmul.f32 %v294, 1.442695
    %v422 = vpow.pop %v421
    %v423 = vmul.f32 %v295, 1.442695
    %v424 = vpow.pop %v423
    %v425 = vmul.f32 %v296, 1.442695
    %v426 = vpow.pop %v425
    %v427 = vmul.f32 %v297, 1.442695
    %v428 = vpow.pop %v427
    %v429 = vmul.f32 %v298, 1.442695
    %v430 = vpow.pop %v429
    %v431 = vmul.f32 %v299, 1.442695
    %v432 = vpow.pop %v431
    %v433 = vmul.f32 %v300, 1.442695
    %v434 = vpow.pop %v433
    %v435 = vmul.f32 %v301, 1.442695
    %v436 = vpow.pop %v435
    %v437 = vmul.f32 %v302, 1.442695
    %v438 = vpow.pop %v437
    %v439 = vmul.f32 %v303, 1.442695
    %v440 = vpow.pop %v439
    %v441 = vmul.f32 %v304, 1.442695
    %v442 = vpow.pop %v441
    %v443 = vmul.f32 %v305, 1.442695
    %v444 = vpow.pop %v443
    %v445 = vmul.f32 %v306, 1.442695
    %v446 = vpow.pop %v445
    %v447 = vmul.f32 %v307, 1.442695
    %v448 = vpow.pop %v447
    %v449 = vmul.f32 %v308, 1.442695
    %v450 = vpow.pop %v449
    %v451 = vmul.f32 %v309, 1.442695
    %v452 = vpow.pop %v451
    %v453 = vmul.f32 %v310, 1.442695
    %v454 = vpow.pop %v453
    %v455 = vmul.f32 %v311, 1.442695
    %v456 = vpow.pop %v455
    %v457 = vmul.f32 %v312, 1.442695
    %v458 = vpow.pop %v457
    %v459 = vmul.f32 %v313, 1.442695
    %v460 = vpow.pop %v459
    %v461 = vmul.f32 %v314, 1.442695
    %v462 = vpow.pop %v461
    %v463 = vmul.f32 %v315, 1.442695
    %v464 = vpow.pop %v463
    %v465 = vmul.f32 %v316, 1.442695
    %v466 = vpow.pop %v465
    %v467 = vmul.f32 %v317, 1.442695
    %v468 = vpow.pop %v467
    %v469 = vmul.f32 %v318, 1.442695
    %v470 = vpow.pop %v469
    %v471 = vmul.f32 %v319, 1.442695
    %v472 = vpow.pop %v471
    %v473 = vmul.f32 %v320, 1.442695
    %v474 = vpow.pop %v473
    %v475 = vmul.f32 %v321, 1.442695
    %v476 = vpow.pop %v475
    %v477 = vmul.f32 %v322, 1.442695
    %v478 = vpow.pop %v477
    %v479 = vmul.f32 %v323, 1.442695
    %v480 = vpow.pop %v479
    %v481 = vmul.f32 %v324, 1.442695
    %v482 = vpow.pop %v481
    %v483 = vmul.f32 %v325, 1.442695
    %v484 = vpow.pop %v483
    %v485 = vmul.f32 %v326, 1.442695
    %v486 = vpow.pop %v485
    %v487 = vmul.f32 %v327, 1.442695
    %v488 = vpow.pop %v487
    %v489 = vmul.f32 %v328, 1.442695
    %v490 = vpow.pop %v489
    %v491 = vmul.f32 %v329, 1.442695
    %v492 = vpow.pop %v491
    %v493 = vmul.f32 %v330, 1.442695
    %v494 = vpow.pop %v493
    %v495 = vmul.f32 %v331, 1.442695
    %v496 = vpow.pop %v495
    %v497 = vmul.f32 %v332, 1.442695
    %v498 = vpow.pop %v497
    %v499 = vmul.f32 %v333, 1.442695
    %v500 = vpow.pop %v499
    %v501 = vmul.f32 %v334, 1.442695
    %v502 = vpow.pop %v501
    %v503 = vmul.f32 %v335, 1.442695
    %v504 = vpow.pop %v503
    %v505 = vmul.f32 %v336, 1.442695
    %v506 = vpow.pop %v505
    %v507 = vmul.f32 %v337, 1.442695
    %v508 = vpow.pop %v507
    %v509 = vmul.f32 %v338, 1.442695
    %v510 = vpow.pop %v509
    %v511 = vmul.f32 %v339, 1.442695
    %v512 = vpow.pop %v511
    %v513 = vmul.f32 %v340, 1.442695
    %v514 = vpow.pop %v513
    %v515 = vmul.f32 %v341, 1.442695
    %v516 = vpow.pop %v515
    %v517 = vmul.f32 %v342, 1.442695
    %v518 = vpow.pop %v517
    %v519 = vmul.f32 %v343, 1.442695
    %v520 = vpow.pop %v519
    %v521 = vmul.f32 %v344, 1.442695
    %v522 = vpow.pop %v521
    %v523 = vmul.f32 %v345, 1.442695
    %v524 = vpow.pop %v523
    %v525 = vmul.f32 %v346, 1.442695
    %v526 = vpow.pop %v525
    %v527 = vmul.f32 %v347, 1.442695
    %v528 = vpow.pop %v527
    %v529 = vmul.f32 %v348, 1.442695
    %v530 = vpow.pop %v529
    %v531 = vmul.f32 %v349, 1.442695
    %v532 = vpow.pop %v531
    %v533 = vmul.f32 %v350, 1.442695
    %v534 = vpow.pop %v533
    %v535 = vmul.f32 %v351, 1.442695
    %v536 = vpow.pop %v535
    %v537 = vmul.f32 %v352, 1.442695
    %v538 = vpow.pop %v537
    %v539 = vmul.f32 %v353, 1.442695
    %v540 = vpow.pop %v539
    %v541 = vmul.f32 %v354, 1.442695
    %v542 = vpow.pop %v541
    %v543 = vmul.f32 %v355, 1.442695
    %v544 = vpow.pop %v543
    %v545 = vmul.f32 %v356, 1.442695
    %v546 = vpow.pop %v545
    %v547 = vmul.f32 %v357, 1.442695
    %v548 = vpow.pop %v547
    %v549 = vmul.f32 %v358, 1.442695
    %v550 = vpow.pop %v549
    %v551 = vmul.f32 %v359, 1.442695
    %v552 = vpow.pop %v551
    %v553 = vmul.f32 %v360, 1.442695
    %v554 = vpow.pop %v553
    %v555 = vmul.f32 %v361, 1.442695
    %v556 = vpow.pop %v555
    %v557 = vmul.f32 %v362, 1.442695
    %v558 = vpow.pop %v557
    %v559 = vmul.f32 %v363, 1.442695
    %v560 = vpow.pop %v559
    %v561 = vmul.f32 %v364, 1.442695
    %v562 = vpow.pop %v561
    %v563 = vmul.f32 %v365, 1.442695
    %v564 = vpow.pop %v563
    %v565 = vmul.f32 %v366, 1.442695
    %v566 = vpow.pop %v565
    %v567 = vadd.f32 %v368, %v370
    %v568 = vadd.f32 %v567, %v372
    %v569 = vadd.f32 %v568, %v374
    %570 = vadd.xlane.f32.xlu0 %v569
    %v571 = vpop.xlane.xlu0 %570
    %v572 = vadd.f32 %v376, %v378
    %v573 = vadd.f32 %v572, %v380
    %v574 = vadd.f32 %v573, %v382
    %575 = vadd.xlane.f32.xlu0 %v574
    %v576 = vpop.xlane.xlu0 %575
    %v577 = vadd.f32 %v384, %v386
    %v578 = vadd.f32 %v577, %v388
    %v579 = vadd.f32 %v578, %v390
    %580 = vadd.xlane.f32.xlu0 %v579
    %v581 = vpop.xlane.xlu0 %580
    %v582 = vadd.f32 %v392, %v394
    %v583 = vadd.f32 %v582, %v396
    %v584 = vadd.f32 %v583, %v398
    %585 = vadd.xlane.f32.xlu0 %v584
    %v586 = vpop.xlane.xlu0 %585
    %v587 = vadd.f32 %v400, %v402
    %v588 = vadd.f32 %v587, %v404
    %v589 = vadd.f32 %v588, %v406
    %590 = vadd.xlane.f32.xlu0 %v589
    %v591 = vpop.xlane.xlu0 %590
    %v592 = vadd.f32 %v408, %v410
    %v593 = vadd.f32 %v592, %v412
    %v594 = vadd.f32 %v593, %v414
    %595 = vadd.xlane.f32.xlu0 %v594
    %v596 = vpop.xlane.xlu0 %595
    %v597 = vadd.f32 %v416, %v418
    %v598 = vadd.f32 %v597, %v420
    %v599 = vadd.f32 %v598, %v422
    %600 = vadd.xlane.f32.xlu0 %v599
    %v601 = vpop.xlane.xlu0 %600
    %v602 = vadd.f32 %v424, %v426
    %v603 = vadd.f32 %v602, %v428
    %v604 = vadd.f32 %v603, %v430
    %605 = vadd.xlane.f32.xlu0 %v604
    %v606 = vpop.xlane.xlu0 %605
    %v607 = vadd.f32 %v432, %v434
    %v608 = vadd.f32 %v607, %v436
    %v609 = vadd.f32 %v608, %v438
    %610 = vadd.xlane.f32.xlu0 %v609
    %v611 = vpop.xlane.xlu0 %610
    %v612 = vadd.f32 %v440, %v442
    %v613 = vadd.f32 %v612, %v444
    %v614 = vadd.f32 %v613, %v446
    %615 = vadd.xlane.f32.xlu0 %v614
    %v616 = vpop.xlane.xlu0 %615
    %v617 = vadd.f32 %v448, %v450
    %v618 = vadd.f32 %v617, %v452
    %v619 = vadd.f32 %v618, %v454
    %620 = vadd.xlane.f32.xlu0 %v619
    %v621 = vpop.xlane.xlu0 %620
    %v622 = vadd.f32 %v456, %v458
    %v623 = vadd.f32 %v622, %v460
    %v624 = vadd.f32 %v623, %v462
    %625 = vadd.xlane.f32.xlu0 %v624
    %v626 = vpop.xlane.xlu0 %625
    %v627 = vadd.f32 %v464, %v466
    %v628 = vadd.f32 %v627, %v468
    %v629 = vadd.f32 %v628, %v470
    %630 = vadd.xlane.f32.xlu0 %v629
    %v631 = vpop.xlane.xlu0 %630
    %v632 = vadd.f32 %v472, %v474
    %v633 = vadd.f32 %v632, %v476
    %v634 = vadd.f32 %v633, %v478
    %635 = vadd.xlane.f32.xlu0 %v634
    %v636 = vpop.xlane.xlu0 %635
    %v637 = vadd.f32 %v480, %v482
    %v638 = vadd.f32 %v637, %v484
    %v639 = vadd.f32 %v638, %v486
    %640 = vadd.xlane.f32.xlu0 %v639
    %v641 = vpop.xlane.xlu0 %640
    %v642 = vadd.f32 %v488, %v490
    %v643 = vadd.f32 %v642, %v492
    %v644 = vadd.f32 %v643, %v494
    %645 = vadd.xlane.f32.xlu0 %v644
    %v646 = vpop.xlane.xlu0 %645
    %v647 = vadd.f32 %v496, %v498
    %v648 = vadd.f32 %v647, %v500
    %v649 = vadd.f32 %v648, %v502
    %650 = vadd.xlane.f32.xlu0 %v649
    %v651 = vpop.xlane.xlu0 %650
    %v652 = vadd.f32 %v504, %v506
    %v653 = vadd.f32 %v652, %v508
    %v654 = vadd.f32 %v653, %v510
    %655 = vadd.xlane.f32.xlu0 %v654
    %v656 = vpop.xlane.xlu0 %655
    %v657 = vadd.f32 %v512, %v514
    %v658 = vadd.f32 %v657, %v516
    %v659 = vadd.f32 %v658, %v518
    %660 = vadd.xlane.f32.xlu0 %v659
    %v661 = vpop.xlane.xlu0 %660
    %v662 = vadd.f32 %v520, %v522
    %v663 = vadd.f32 %v662, %v524
    %v664 = vadd.f32 %v663, %v526
    %665 = vadd.xlane.f32.xlu0 %v664
    %v666 = vpop.xlane.xlu0 %665
    %v667 = vadd.f32 %v528, %v530
    %v668 = vadd.f32 %v667, %v532
    %v669 = vadd.f32 %v668, %v534
    %670 = vadd.xlane.f32.xlu0 %v669
    %v671 = vpop.xlane.xlu0 %670
    %v672 = vadd.f32 %v536, %v538
    %v673 = vadd.f32 %v672, %v540
    %v674 = vadd.f32 %v673, %v542
    %675 = vadd.xlane.f32.xlu0 %v674
    %v676 = vpop.xlane.xlu0 %675
    %v677 = vadd.f32 %v544, %v546
    %v678 = vadd.f32 %v677, %v548
    %v679 = vadd.f32 %v678, %v550
    %680 = vadd.xlane.f32.xlu0 %v679
    %v681 = vpop.xlane.xlu0 %680
    %v682 = vadd.f32 %v552, %v554
    %v683 = vadd.f32 %v682, %v556
    %v684 = vadd.f32 %v683, %v558
    %685 = vadd.xlane.f32.xlu0 %v684
    %v686 = vpop.xlane.xlu0 %685
    %v687 = vadd.f32 %v560, %v562
    %v688 = vadd.f32 %v687, %v564
    %v689 = vadd.f32 %v688, %v566
    %690 = vadd.xlane.f32.xlu0 %v689
    %v691 = vpop.xlane.xlu0 %690
    %v692 = vrcp.pop %v571
    %v693 = vrcp.pop %v576
    %v694 = vrcp.pop %v581
    %v695 = vrcp.pop %v586
    %v696 = vrcp.pop %v591
    %v697 = vrcp.pop %v596
    %v698 = vrcp.pop %v601
    %v699 = vrcp.pop %v606
    %v700 = vrcp.pop %v611
    %v701 = vrcp.pop %v616
    %v702 = vrcp.pop %v621
    %v703 = vrcp.pop %v626
    %v704 = vrcp.pop %v631
    %v705 = vrcp.pop %v636
    %v706 = vrcp.pop %v641
    %v707 = vrcp.pop %v646
    %v708 = vrcp.pop %v651
    %v709 = vrcp.pop %v656
    %v710 = vrcp.pop %v661
    %v711 = vrcp.pop %v666
    %v712 = vrcp.pop %v671
    %v713 = vrcp.pop %v676
    %v714 = vrcp.pop %v681
    %v715 = vrcp.pop %v686
    %v716 = vrcp.pop %v691
    %v717 = vmul.f32 %v368, %v267
    %v718 = vmul.f32 %v370, %v268
    %v719 = vmul.f32 %v372, %v269
    %v720 = vmul.f32 %v374, %v270
    %v721 = vmul.f32 %v376, %v271
    %v722 = vmul.f32 %v378, %v272
    %v723 = vmul.f32 %v380, %v273
    %v724 = vmul.f32 %v382, %v274
    %v725 = vmul.f32 %v384, %v275
    %v726 = vmul.f32 %v386, %v276
    %v727 = vmul.f32 %v388, %v277
    %v728 = vmul.f32 %v390, %v278
    %v729 = vmul.f32 %v392, %v279
    %v730 = vmul.f32 %v394, %v280
    %v731 = vmul.f32 %v396, %v281
    %v732 = vmul.f32 %v398, %v282
    %v733 = vmul.f32 %v400, %v283
    %v734 = vmul.f32 %v402, %v284
    %v735 = vmul.f32 %v404, %v285
    %v736 = vmul.f32 %v406, %v286
    %v737 = vmul.f32 %v408, %v287
    %v738 = vmul.f32 %v410, %v288
    %v739 = vmul.f32 %v412, %v289
    %v740 = vmul.f32 %v414, %v290
    %v741 = vmul.f32 %v416, %v291
    %v742 = vmul.f32 %v418, %v292
    %v743 = vmul.f32 %v420, %v293
    %v744 = vmul.f32 %v422, %v294
    %v745 = vmul.f32 %v424, %v295
    %v746 = vmul.f32 %v426, %v296
    %v747 = vmul.f32 %v428, %v297
    %v748 = vmul.f32 %v430, %v298
    %v749 = vmul.f32 %v432, %v299
    %v750 = vmul.f32 %v434, %v300
    %v751 = vmul.f32 %v436, %v301
    %v752 = vmul.f32 %v438, %v302
    %v753 = vmul.f32 %v440, %v303
    %v754 = vmul.f32 %v442, %v304
    %v755 = vmul.f32 %v444, %v305
    %v756 = vmul.f32 %v446, %v306
    %v757 = vmul.f32 %v448, %v307
    %v758 = vmul.f32 %v450, %v308
    %v759 = vmul.f32 %v452, %v309
    %v760 = vmul.f32 %v454, %v310
    %v761 = vmul.f32 %v456, %v311
    %v762 = vmul.f32 %v458, %v312
    %v763 = vmul.f32 %v460, %v313
    %v764 = vmul.f32 %v462, %v314
    %v765 = vmul.f32 %v464, %v315
    %v766 = vmul.f32 %v466, %v316
    %v767 = vmul.f32 %v468, %v317
    %v768 = vmul.f32 %v470, %v318
    %v769 = vmul.f32 %v472, %v319
    %v770 = vmul.f32 %v474, %v320
    %v771 = vmul.f32 %v476, %v321
    %v772 = vmul.f32 %v478, %v322
    %v773 = vmul.f32 %v480, %v323
    %v774 = vmul.f32 %v482, %v324
    %v775 = vmul.f32 %v484, %v325
    %v776 = vmul.f32 %v486, %v326
    %v777 = vmul.f32 %v488, %v327
    %v778 = vmul.f32 %v490, %v328
    %v779 = vmul.f32 %v492, %v329
    %v780 = vmul.f32 %v494, %v330
    %v781 = vmul.f32 %v496, %v331
    %v782 = vmul.f32 %v498, %v332
    %v783 = vmul.f32 %v500, %v333
    %v784 = vmul.f32 %v502, %v334
    %v785 = vmul.f32 %v504, %v335
    %v786 = vmul.f32 %v506, %v336
    %v787 = vmul.f32 %v508, %v337
    %v788 = vmul.f32 %v510, %v338
    %v789 = vmul.f32 %v512, %v339
    %v790 = vmul.f32 %v514, %v340
    %v791 = vmul.f32 %v516, %v341
    %v792 = vmul.f32 %v518, %v342
    %v793 = vmul.f32 %v520, %v343
    %v794 = vmul.f32 %v522, %v344
    %v795 = vmul.f32 %v524, %v345
    %v796 = vmul.f32 %v526, %v346
    %v797 = vmul.f32 %v528, %v347
    %v798 = vmul.f32 %v530, %v348
    %v799 = vmul.f32 %v532, %v349
    %v800 = vmul.f32 %v534, %v350
    %v801 = vmul.f32 %v536, %v351
    %v802 = vmul.f32 %v538, %v352
    %v803 = vmul.f32 %v540, %v353
    %v804 = vmul.f32 %v542, %v354
    %v805 = vmul.f32 %v544, %v355
    %v806 = vmul.f32 %v546, %v356
    %v807 = vmul.f32 %v548, %v357
    %v808 = vmul.f32 %v550, %v358
    %v809 = vmul.f32 %v552, %v359
    %v810 = vmul.f32 %v554, %v360
    %v811 = vmul.f32 %v556, %v361
    %v812 = vmul.f32 %v558, %v362
    %v813 = vmul.f32 %v560, %v363
    %v814 = vmul.f32 %v562, %v364
    %v815 = vmul.f32 %v564, %v365
    %v816 = vmul.f32 %v566, %v366
    %v817 = vadd.f32 %v717, %v718
    %v818 = vadd.f32 %v817, %v719
    %v819 = vadd.f32 %v818, %v720
    %820 = vadd.xlane.f32.xlu0 %v819
    %v821 = vpop.xlane.xlu0 %820
    %v822 = vadd.f32 %v721, %v722
    %v823 = vadd.f32 %v822, %v723
    %v824 = vadd.f32 %v823, %v724
    %825 = vadd.xlane.f32.xlu0 %v824
    %v826 = vpop.xlane.xlu0 %825
    %v827 = vadd.f32 %v725, %v726
    %v828 = vadd.f32 %v827, %v727
    %v829 = vadd.f32 %v828, %v728
    %830 = vadd.xlane.f32.xlu0 %v829
    %v831 = vpop.xlane.xlu0 %830
    %v832 = vadd.f32 %v729, %v730
    %v833 = vadd.f32 %v832, %v731
    %v834 = vadd.f32 %v833, %v732
    %835 = vadd.xlane.f32.xlu0 %v834
    %v836 = vpop.xlane.xlu0 %835
    %v837 = vadd.f32 %v733, %v734
    %v838 = vadd.f32 %v837, %v735
    %v839 = vadd.f32 %v838, %v736
    %840 = vadd.xlane.f32.xlu0 %v839
    %v841 = vpop.xlane.xlu0 %840
    %v842 = vadd.f32 %v737, %v738
    %v843 = vadd.f32 %v842, %v739
    %v844 = vadd.f32 %v843, %v740
    %845 = vadd.xlane.f32.xlu0 %v844
    %v846 = vpop.xlane.xlu0 %845
    %v847 = vadd.f32 %v741, %v742
    %v848 = vadd.f32 %v847, %v743
    %v849 = vadd.f32 %v848, %v744
    %850 = vadd.xlane.f32.xlu0 %v849
    %v851 = vpop.xlane.xlu0 %850
    %v852 = vadd.f32 %v745, %v746
    %v853 = vadd.f32 %v852, %v747
    %v854 = vadd.f32 %v853, %v748
    %855 = vadd.xlane.f32.xlu0 %v854
    %v856 = vpop.xlane.xlu0 %855
    %v857 = vadd.f32 %v749, %v750
    %v858 = vadd.f32 %v857, %v751
    %v859 = vadd.f32 %v858, %v752
    %860 = vadd.xlane.f32.xlu0 %v859
    %v861 = vpop.xlane.xlu0 %860
    %v862 = vadd.f32 %v753, %v754
    %v863 = vadd.f32 %v862, %v755
    %v864 = vadd.f32 %v863, %v756
    %865 = vadd.xlane.f32.xlu0 %v864
    %v866 = vpop.xlane.xlu0 %865
    %v867 = vadd.f32 %v757, %v758
    %v868 = vadd.f32 %v867, %v759
    %v869 = vadd.f32 %v868, %v760
    %870 = vadd.xlane.f32.xlu0 %v869
    %v871 = vpop.xlane.xlu0 %870
    %v872 = vadd.f32 %v761, %v762
    %v873 = vadd.f32 %v872, %v763
    %v874 = vadd.f32 %v873, %v764
    %875 = vadd.xlane.f32.xlu0 %v874
    %v876 = vpop.xlane.xlu0 %875
    %v877 = vadd.f32 %v765, %v766
    %v878 = vadd.f32 %v877, %v767
    %v879 = vadd.f32 %v878, %v768
    %880 = vadd.xlane.f32.xlu0 %v879
    %v881 = vpop.xlane.xlu0 %880
    %v882 = vadd.f32 %v769, %v770
    %v883 = vadd.f32 %v882, %v771
    %v884 = vadd.f32 %v883, %v772
    %885 = vadd.xlane.f32.xlu0 %v884
    %v886 = vpop.xlane.xlu0 %885
    %v887 = vadd.f32 %v773, %v774
    %v888 = vadd.f32 %v887, %v775
    %v889 = vadd.f32 %v888, %v776
    %890 = vadd.xlane.f32.xlu0 %v889
    %v891 = vpop.xlane.xlu0 %890
    %v892 = vadd.f32 %v777, %v778
    %v893 = vadd.f32 %v892, %v779
    %v894 = vadd.f32 %v893, %v780
    %895 = vadd.xlane.f32.xlu0 %v894
    %v896 = vpop.xlane.xlu0 %895
    %v897 = vadd.f32 %v781, %v782
    %v898 = vadd.f32 %v897, %v783
    %v899 = vadd.f32 %v898, %v784
    %900 = vadd.xlane.f32.xlu0 %v899
    %v901 = vpop.xlane.xlu0 %900
    %v902 = vadd.f32 %v785, %v786
    %v903 = vadd.f32 %v902, %v787
    %v904 = vadd.f32 %v903, %v788
    %905 = vadd.xlane.f32.xlu0 %v904
    %v906 = vpop.xlane.xlu0 %905
    %v907 = vadd.f32 %v789, %v790
    %v908 = vadd.f32 %v907, %v791
    %v909 = vadd.f32 %v908, %v792
    %910 = vadd.xlane.f32.xlu0 %v909
    %v911 = vpop.xlane.xlu0 %910
    %v912 = vadd.f32 %v793, %v794
    %v913 = vadd.f32 %v912, %v795
    %v914 = vadd.f32 %v913, %v796
    %915 = vadd.xlane.f32.xlu0 %v914
    %v916 = vpop.xlane.xlu0 %915
    %v917 = vadd.f32 %v797, %v798
    %v918 = vadd.f32 %v917, %v799
    %v919 = vadd.f32 %v918, %v800
    %920 = vadd.xlane.f32.xlu0 %v919
    %v921 = vpop.xlane.xlu0 %920
    %v922 = vadd.f32 %v801, %v802
    %v923 = vadd.f32 %v922, %v803
    %v924 = vadd.f32 %v923, %v804
    %925 = vadd.xlane.f32.xlu0 %v924
    %v926 = vpop.xlane.xlu0 %925
    %v927 = vadd.f32 %v805, %v806
    %v928 = vadd.f32 %v927, %v807
    %v929 = vadd.f32 %v928, %v808
    %930 = vadd.xlane.f32.xlu0 %v929
    %v931 = vpop.xlane.xlu0 %930
    %v932 = vadd.f32 %v809, %v810
    %v933 = vadd.f32 %v932, %v811
    %v934 = vadd.f32 %v933, %v812
    %935 = vadd.xlane.f32.xlu0 %v934
    %v936 = vpop.xlane.xlu0 %935
    %v937 = vadd.f32 %v813, %v814
    %v938 = vadd.f32 %v937, %v815
    %v939 = vadd.f32 %v938, %v816
    %940 = vadd.xlane.f32.xlu0 %v939
    %v941 = vpop.xlane.xlu0 %940
    %v942 = vmul.f32 %v821, %v692
    %v943 = vmul.f32 %v826, %v693
    %v944 = vmul.f32 %v831, %v694
    %v945 = vmul.f32 %v836, %v695
    %v946 = vmul.f32 %v841, %v696
    %v947 = vmul.f32 %v846, %v697
    %v948 = vmul.f32 %v851, %v698
    %v949 = vmul.f32 %v856, %v699
    %v950 = vmul.f32 %v861, %v700
    %v951 = vmul.f32 %v866, %v701
    %v952 = vmul.f32 %v871, %v702
    %v953 = vmul.f32 %v876, %v703
    %v954 = vmul.f32 %v881, %v704
    %v955 = vmul.f32 %v886, %v705
    %v956 = vmul.f32 %v891, %v706
    %v957 = vmul.f32 %v896, %v707
    %v958 = vmul.f32 %v901, %v708
    %v959 = vmul.f32 %v906, %v709
    %v960 = vmul.f32 %v911, %v710
    %v961 = vmul.f32 %v916, %v711
    %v962 = vmul.f32 %v921, %v712
    %v963 = vmul.f32 %v926, %v713
    %v964 = vmul.f32 %v931, %v714
    %v965 = vmul.f32 %v936, %v715
    %v966 = vmul.f32 %v941, %v716
    %v967 = vlog2.pop %v571
    %v968 = vmul.f32 %v967, 0.6931472
    %v969 = vlog2.pop %v576
    %v970 = vmul.f32 %v969, 0.6931472
    %v971 = vlog2.pop %v581
    %v972 = vmul.f32 %v971, 0.6931472
    %v973 = vlog2.pop %v586
    %v974 = vmul.f32 %v973, 0.6931472
    %v975 = vlog2.pop %v591
    %v976 = vmul.f32 %v975, 0.6931472
    %v977 = vlog2.pop %v596
    %v978 = vmul.f32 %v977, 0.6931472
    %v979 = vlog2.pop %v601
    %v980 = vmul.f32 %v979, 0.6931472
    %v981 = vlog2.pop %v606
    %v982 = vmul.f32 %v981, 0.6931472
    %v983 = vlog2.pop %v611
    %v984 = vmul.f32 %v983, 0.6931472
    %v985 = vlog2.pop %v616
    %v986 = vmul.f32 %v985, 0.6931472
    %v987 = vlog2.pop %v621
    %v988 = vmul.f32 %v987, 0.6931472
    %v989 = vlog2.pop %v626
    %v990 = vmul.f32 %v989, 0.6931472
    %v991 = vlog2.pop %v631
    %v992 = vmul.f32 %v991, 0.6931472
    %v993 = vlog2.pop %v636
    %v994 = vmul.f32 %v993, 0.6931472
    %v995 = vlog2.pop %v641
    %v996 = vmul.f32 %v995, 0.6931472
    %v997 = vlog2.pop %v646
    %v998 = vmul.f32 %v997, 0.6931472
    %v999 = vlog2.pop %v651
    %v1000 = vmul.f32 %v999, 0.6931472
    %v1001 = vlog2.pop %v656
    %v1002 = vmul.f32 %v1001, 0.6931472
    %v1003 = vlog2.pop %v661
    %v1004 = vmul.f32 %v1003, 0.6931472
    %v1005 = vlog2.pop %v666
    %v1006 = vmul.f32 %v1005, 0.6931472
    %v1007 = vlog2.pop %v671
    %v1008 = vmul.f32 %v1007, 0.6931472
    %v1009 = vlog2.pop %v676
    %v1010 = vmul.f32 %v1009, 0.6931472
    %v1011 = vlog2.pop %v681
    %v1012 = vmul.f32 %v1011, 0.6931472
    %v1013 = vlog2.pop %v686
    %v1014 = vmul.f32 %v1013, 0.6931472
    %v1015 = vlog2.pop %v691
    %v1016 = vmul.f32 %v1015, 0.6931472
    %v1017 = vsub.f32 %v942, %v968
    %v1018 = vsub.f32 %v943, %v970
    %v1019 = vsub.f32 %v944, %v972
    %v1020 = vsub.f32 %v945, %v974
    %v1021 = vsub.f32 %v946, %v976
    %v1022 = vsub.f32 %v947, %v978
    %v1023 = vsub.f32 %v948, %v980
    %v1024 = vsub.f32 %v949, %v982
    %v1025 = vsub.f32 %v950, %v984
    %v1026 = vsub.f32 %v951, %v986
    %v1027 = vsub.f32 %v952, %v988
    %v1028 = vsub.f32 %v953, %v990
    %v1029 = vsub.f32 %v954, %v992
    %v1030 = vsub.f32 %v955, %v994
    %v1031 = vsub.f32 %v956, %v996
    %v1032 = vsub.f32 %v957, %v998
    %v1033 = vsub.f32 %v958, %v1000
    %v1034 = vsub.f32 %v959, %v1002
    %v1035 = vsub.f32 %v960, %v1004
    %v1036 = vsub.f32 %v961, %v1006
    %v1037 = vsub.f32 %v962, %v1008
    %v1038 = vsub.f32 %v963, %v1010
    %v1039 = vsub.f32 %v964, %v1012
    %v1040 = vsub.f32 %v965, %v1014
    %v1041 = vsub.f32 %v966, %v1016
    %v1042 = vadd.f32 %v1017, 6.2383246
    %v1043 = vadd.f32 %v1018, 6.2383246
    %v1044 = vadd.f32 %v1019, 6.2383246
    %v1045 = vadd.f32 %v1020, 6.2383246
    %v1046 = vadd.f32 %v1021, 6.2383246
    %v1047 = vadd.f32 %v1022, 6.2383246
    %v1048 = vadd.f32 %v1023, 6.2383246
    %v1049 = vadd.f32 %v1024, 6.2383246
    %v1050 = vadd.f32 %v1025, 6.2383246
    %v1051 = vadd.f32 %v1026, 6.2383246
    %v1052 = vadd.f32 %v1027, 6.2383246
    %v1053 = vadd.f32 %v1028, 6.2383246
    %v1054 = vadd.f32 %v1029, 6.2383246
    %v1055 = vadd.f32 %v1030, 6.2383246
    %v1056 = vadd.f32 %v1031, 6.2383246
    %v1057 = vadd.f32 %v1032, 6.2383246
    %v1058 = vadd.f32 %v1033, 6.2383246
    %v1059 = vadd.f32 %v1034, 6.2383246
    %v1060 = vadd.f32 %v1035, 6.2383246
    %v1061 = vadd.f32 %v1036, 6.2383246
    %v1062 = vadd.f32 %v1037, 6.2383246
    %v1063 = vadd.f32 %v1038, 6.2383246
    %v1064 = vadd.f32 %v1039, 6.2383246
    %v1065 = vadd.f32 %v1040, 6.2383246
    %v1066 = vadd.f32 %v1041, 6.2383246
    %vm1067 = vcmask 7168
    %1068 = vst.msk [vmem:[%s3] sm:$0xff] %vm1067, %v1042
    %1069 = vst.msk [vmem:[%s3 + $0x8] sm:$0xff] %vm1067, %v1043
    %1070 = vst.msk [vmem:[%s3 + $0x10] sm:$0xff] %vm1067, %v1044
    %1071 = vst.msk [vmem:[%s3 + $0x18] sm:$0xff] %vm1067, %v1045
    %1072 = vst.msk [vmem:[%s3 + $0x20] sm:$0xff] %vm1067, %v1046
    %1073 = vst.msk [vmem:[%s3 + $0x28] sm:$0xff] %vm1067, %v1047
    %1074 = vst.msk [vmem:[%s3 + $0x30] sm:$0xff] %vm1067, %v1048
    %1075 = vst.msk [vmem:[%s3 + $0x38] sm:$0xff] %vm1067, %v1049
    %1076 = vst.msk [vmem:[%s3 + $0x40] sm:$0xff] %vm1067, %v1050
    %1077 = vst.msk [vmem:[%s3 + $0x48] sm:$0xff] %vm1067, %v1051
    %1078 = vst.msk [vmem:[%s3 + $0x50] sm:$0xff] %vm1067, %v1052
    %1079 = vst.msk [vmem:[%s3 + $0x58] sm:$0xff] %vm1067, %v1053
    %1080 = vst.msk [vmem:[%s3 + $0x60] sm:$0xff] %vm1067, %v1054
    %1081 = vst.msk [vmem:[%s3 + $0x68] sm:$0xff] %vm1067, %v1055
    %1082 = vst.msk [vmem:[%s3 + $0x70] sm:$0xff] %vm1067, %v1056
    %1083 = vst.msk [vmem:[%s3 + $0x78] sm:$0xff] %vm1067, %v1057
    %1084 = vst.msk [vmem:[%s3 + $0x80] sm:$0xff] %vm1067, %v1058
    %1085 = vst.msk [vmem:[%s3 + $0x88] sm:$0xff] %vm1067, %v1059
    %1086 = vst.msk [vmem:[%s3 + $0x90] sm:$0xff] %vm1067, %v1060
    %1087 = vst.msk [vmem:[%s3 + $0x98] sm:$0xff] %vm1067, %v1061
    %1088 = vst.msk [vmem:[%s3 + $0xa0] sm:$0xff] %vm1067, %v1062
    %1089 = vst.msk [vmem:[%s3 + $0xa8] sm:$0xff] %vm1067, %v1063
    %1090 = vst.msk [vmem:[%s3 + $0xb0] sm:$0xff] %vm1067, %v1064
    %1091 = vst.msk [vmem:[%s3 + $0xb8] sm:$0xff] %vm1067, %v1065
    %1092 = vst.msk [vmem:[%s3 + $0xc0] sm:$0xff] %vm1067, %v1066
    %v1093 = vld [vmem:[#allocation5] sm:$0xff]
    %v1094 = vld [vmem:[#allocation5 + $0x8] sm:$0xff]
    %v1095 = vld [vmem:[#allocation5 + $0x10] sm:$0xff]
    %v1096 = vld [vmem:[#allocation5 + $0x18] sm:$0xff]
    %v1097 = vld [vmem:[#allocation5 + $0x20] sm:$0xff]
    %v1098 = vld [vmem:[#allocation5 + $0x28] sm:$0xff]
    %v1099 = vld [vmem:[#allocation5 + $0x30] sm:$0xff]
    %v1100 = vld [vmem:[#allocation5 + $0x38] sm:$0xff]
    %v1101 = vld [vmem:[#allocation5 + $0x40] sm:$0xff]
    %v1102 = vld [vmem:[#allocation5 + $0x48] sm:$0xff]
    %v1103 = vld [vmem:[#allocation5 + $0x50] sm:$0xff]
    %v1104 = vld [vmem:[#allocation5 + $0x58] sm:$0xff]
    %v1105 = vld [vmem:[#allocation5 + $0x60] sm:$0xff]
    %v1106 = vld [vmem:[#allocation5 + $0x68] sm:$0xff]
    %v1107 = vld [vmem:[#allocation5 + $0x70] sm:$0xff]
    %v1108 = vld [vmem:[#allocation5 + $0x78] sm:$0xff]
    %v1109 = vld [vmem:[#allocation5 + $0x80] sm:$0xff]
    %v1110 = vld [vmem:[#allocation5 + $0x88] sm:$0xff]
    %v1111 = vld [vmem:[#allocation5 + $0x90] sm:$0xff]
    %v1112 = vld [vmem:[#allocation5 + $0x98] sm:$0xff]
    %v1113 = vld [vmem:[#allocation5 + $0xa0] sm:$0xff]
    %v1114 = vld [vmem:[#allocation5 + $0xa8] sm:$0xff]
    %v1115 = vld [vmem:[#allocation5 + $0xb0] sm:$0xff]
    %v1116 = vld [vmem:[#allocation5 + $0xb8] sm:$0xff]
    %v1117 = vld [vmem:[#allocation5 + $0xc0] sm:$0xff]
    %v1118 = vld [vmem:[#allocation5 + $0xc8] sm:$0xff]
    %v1119 = vld [vmem:[#allocation5 + $0xd0] sm:$0xff]
    %v1120 = vld [vmem:[#allocation5 + $0xd8] sm:$0xff]
    %v1121 = vld [vmem:[#allocation5 + $0xe0] sm:$0xff]
    %v1122 = vld [vmem:[#allocation5 + $0xe8] sm:$0xff]
    %v1123 = vld [vmem:[#allocation5 + $0xf0] sm:$0xff]
    %v1124 = vld [vmem:[#allocation5 + $0xf8] sm:$0xff]
    %v1125 = vld [vmem:[#allocation5 + $0x100] sm:$0xff]
    %v1126 = vld [vmem:[#allocation5 + $0x108] sm:$0xff]
    %v1127 = vld [vmem:[#allocation5 + $0x110] sm:$0xff]
    %v1128 = vld [vmem:[#allocation5 + $0x118] sm:$0xff]
    %v1129 = vld [vmem:[#allocation5 + $0x120] sm:$0xff]
    %v1130 = vld [vmem:[#allocation5 + $0x128] sm:$0xff]
    %v1131 = vld [vmem:[#allocation5 + $0x130] sm:$0xff]
    %v1132 = vld [vmem:[#allocation5 + $0x138] sm:$0xff]
    %v1133 = vld [vmem:[#allocation5 + $0x140] sm:$0xff]
    %v1134 = vld [vmem:[#allocation5 + $0x148] sm:$0xff]
    %v1135 = vld [vmem:[#allocation5 + $0x150] sm:$0xff]
    %v1136 = vld [vmem:[#allocation5 + $0x158] sm:$0xff]
    %v1137 = vld [vmem:[#allocation5 + $0x160] sm:$0xff]
    %v1138 = vld [vmem:[#allocation5 + $0x168] sm:$0xff]
    %v1139 = vld [vmem:[#allocation5 + $0x170] sm:$0xff]
    %v1140 = vld [vmem:[#allocation5 + $0x178] sm:$0xff]
    %v1141 = vld [vmem:[#allocation5 + $0x180] sm:$0xff]
    %v1142 = vld [vmem:[#allocation5 + $0x188] sm:$0xff]
    %v1143 = vld [vmem:[#allocation5 + $0x190] sm:$0xff]
    %v1144 = vld [vmem:[#allocation5 + $0x198] sm:$0xff]
    %v1145 = vld [vmem:[#allocation5 + $0x1a0] sm:$0xff]
    %v1146 = vld [vmem:[#allocation5 + $0x1a8] sm:$0xff]
    %v1147 = vld [vmem:[#allocation5 + $0x1b0] sm:$0xff]
    %v1148 = vld [vmem:[#allocation5 + $0x1b8] sm:$0xff]
    %v1149 = vld [vmem:[#allocation5 + $0x1c0] sm:$0xff]
    %v1150 = vld [vmem:[#allocation5 + $0x1c8] sm:$0xff]
    %v1151 = vld [vmem:[#allocation5 + $0x1d0] sm:$0xff]
    %v1152 = vld [vmem:[#allocation5 + $0x1d8] sm:$0xff]
    %v1153 = vld [vmem:[#allocation5 + $0x1e0] sm:$0xff]
    %v1154 = vld [vmem:[#allocation5 + $0x1e8] sm:$0xff]
    %v1155 = vld [vmem:[#allocation5 + $0x1f0] sm:$0xff]
    %v1156 = vld [vmem:[#allocation5 + $0x1f8] sm:$0xff]
    %v1157 = vld [vmem:[#allocation5 + $0x200] sm:$0xff]
    %v1158 = vld [vmem:[#allocation5 + $0x208] sm:$0xff]
    %v1159 = vld [vmem:[#allocation5 + $0x210] sm:$0xff]
    %v1160 = vld [vmem:[#allocation5 + $0x218] sm:$0xff]
    %v1161 = vld [vmem:[#allocation5 + $0x220] sm:$0xff]
    %v1162 = vld [vmem:[#allocation5 + $0x228] sm:$0xff]
    %v1163 = vld [vmem:[#allocation5 + $0x230] sm:$0xff]
    %v1164 = vld [vmem:[#allocation5 + $0x238] sm:$0xff]
    %v1165 = vld [vmem:[#allocation5 + $0x240] sm:$0xff]
    %v1166 = vld [vmem:[#allocation5 + $0x248] sm:$0xff]
    %v1167 = vld [vmem:[#allocation5 + $0x250] sm:$0xff]
    %v1168 = vld [vmem:[#allocation5 + $0x258] sm:$0xff]
    %v1169 = vld [vmem:[#allocation5 + $0x260] sm:$0xff]
    %v1170 = vld [vmem:[#allocation5 + $0x268] sm:$0xff]
    %v1171 = vld [vmem:[#allocation5 + $0x270] sm:$0xff]
    %v1172 = vld [vmem:[#allocation5 + $0x278] sm:$0xff]
    %v1173 = vld [vmem:[#allocation5 + $0x280] sm:$0xff]
    %v1174 = vld [vmem:[#allocation5 + $0x288] sm:$0xff]
    %v1175 = vld [vmem:[#allocation5 + $0x290] sm:$0xff]
    %v1176 = vld [vmem:[#allocation5 + $0x298] sm:$0xff]
    %v1177 = vld [vmem:[#allocation5 + $0x2a0] sm:$0xff]
    %v1178 = vld [vmem:[#allocation5 + $0x2a8] sm:$0xff]
    %v1179 = vld [vmem:[#allocation5 + $0x2b0] sm:$0xff]
    %v1180 = vld [vmem:[#allocation5 + $0x2b8] sm:$0xff]
    %v1181 = vld [vmem:[#allocation5 + $0x2c0] sm:$0xff]
    %v1182 = vld [vmem:[#allocation5 + $0x2c8] sm:$0xff]
    %v1183 = vld [vmem:[#allocation5 + $0x2d0] sm:$0xff]
    %v1184 = vld [vmem:[#allocation5 + $0x2d8] sm:$0xff]
    %v1185 = vld [vmem:[#allocation5 + $0x2e0] sm:$0xff]
    %v1186 = vld [vmem:[#allocation5 + $0x2e8] sm:$0xff]
    %v1187 = vld [vmem:[#allocation5 + $0x2f0] sm:$0xff]
    %v1188 = vld [vmem:[#allocation5 + $0x2f8] sm:$0xff]
    %v1189 = vld [vmem:[#allocation5 + $0x300] sm:$0xff]
    %v1190 = vld [vmem:[#allocation5 + $0x308] sm:$0xff]
    %v1191 = vld [vmem:[#allocation5 + $0x310] sm:$0xff]
    %v1192 = vld [vmem:[#allocation5 + $0x318] sm:$0xff]
    %v1193 = vld [vmem:[#allocation5 + $0x320] sm:$0xff]
    %v1194 = vld [vmem:[#allocation5 + $0x328] sm:$0xff]
    %v1195 = vld [vmem:[#allocation5 + $0x330] sm:$0xff]
    %v1196 = vld [vmem:[#allocation5 + $0x338] sm:$0xff]
    %v1197 = vld [vmem:[#allocation5 + $0x340] sm:$0xff]
    %v1198 = vld [vmem:[#allocation5 + $0x348] sm:$0xff]
    %v1199 = vld [vmem:[#allocation5 + $0x350] sm:$0xff]
    %v1200 = vld [vmem:[#allocation5 + $0x358] sm:$0xff]
    %v1201 = vld [vmem:[#allocation5 + $0x360] sm:$0xff]
    %v1202 = vld [vmem:[#allocation5 + $0x368] sm:$0xff]
    %v1203 = vld [vmem:[#allocation5 + $0x370] sm:$0xff]
    %v1204 = vld [vmem:[#allocation5 + $0x378] sm:$0xff]
    %v1205 = vld [vmem:[#allocation5 + $0x380] sm:$0xff]
    %v1206 = vld [vmem:[#allocation5 + $0x388] sm:$0xff]
    %v1207 = vld [vmem:[#allocation5 + $0x390] sm:$0xff]
    %v1208 = vld [vmem:[#allocation5 + $0x398] sm:$0xff]
    %v1209 = vld [vmem:[#allocation5 + $0x3a0] sm:$0xff]
    %v1210 = vld [vmem:[#allocation5 + $0x3a8] sm:$0xff]
    %v1211 = vld [vmem:[#allocation5 + $0x3b0] sm:$0xff]
    %v1212 = vld [vmem:[#allocation5 + $0x3b8] sm:$0xff]
    %v1213 = vld [vmem:[#allocation5 + $0x3c0] sm:$0xff]
    %v1214 = vld [vmem:[#allocation5 + $0x3c8] sm:$0xff]
    %v1215 = vld [vmem:[#allocation5 + $0x3d0] sm:$0xff]
    %v1216 = vld [vmem:[#allocation5 + $0x3d8] sm:$0xff]
    %v1217 = vld [vmem:[#allocation5 + $0x3e0] sm:$0xff]
    %v1218 = vld [vmem:[#allocation5 + $0x3e8] sm:$0xff]
    %v1219 = vld [vmem:[#allocation5 + $0x3f0] sm:$0xff]
    %v1220 = vld [vmem:[#allocation5 + $0x3f8] sm:$0xff]
    %v1221 = vpack.c.bf16 %v376, %v368
    %v1222 = vpack.c.bf16 %v378, %v370
    %v1223 = vpack.c.bf16 %v380, %v372
    %v1224 = vpack.c.bf16 %v382, %v374
    %v1225 = vpack.c.bf16 %v392, %v384
    %v1226 = vpack.c.bf16 %v394, %v386
    %v1227 = vpack.c.bf16 %v396, %v388
    %v1228 = vpack.c.bf16 %v398, %v390
    %v1229 = vpack.c.bf16 %v408, %v400
    %v1230 = vpack.c.bf16 %v410, %v402
    %v1231 = vpack.c.bf16 %v412, %v404
    %v1232 = vpack.c.bf16 %v414, %v406
    %v1233 = vpack.c.bf16 %v424, %v416
    %v1234 = vpack.c.bf16 %v426, %v418
    %v1235 = vpack.c.bf16 %v428, %v420
    %v1236 = vpack.c.bf16 %v430, %v422
    %v1237 = vpack.c.bf16 %v440, %v432
    %v1238 = vpack.c.bf16 %v442, %v434
    %v1239 = vpack.c.bf16 %v444, %v436
    %v1240 = vpack.c.bf16 %v446, %v438
    %v1241 = vpack.c.bf16 %v456, %v448
    %v1242 = vpack.c.bf16 %v458, %v450
    %v1243 = vpack.c.bf16 %v460, %v452
    %v1244 = vpack.c.bf16 %v462, %v454
    %v1245 = vpack.c.bf16 %v472, %v464
    %v1246 = vpack.c.bf16 %v474, %v466
    %v1247 = vpack.c.bf16 %v476, %v468
    %v1248 = vpack.c.bf16 %v478, %v470
    %v1249 = vpack.c.bf16 %v488, %v480
    %v1250 = vpack.c.bf16 %v490, %v482
    %v1251 = vpack.c.bf16 %v492, %v484
    %v1252 = vpack.c.bf16 %v494, %v486
    %v1253 = vpack.c.bf16 %v504, %v496
    %v1254 = vpack.c.bf16 %v506, %v498
    %v1255 = vpack.c.bf16 %v508, %v500
    %v1256 = vpack.c.bf16 %v510, %v502
    %v1257 = vpack.c.bf16 %v520, %v512
    %v1258 = vpack.c.bf16 %v522, %v514
    %v1259 = vpack.c.bf16 %v524, %v516
    %v1260 = vpack.c.bf16 %v526, %v518
    %v1261 = vpack.c.bf16 %v536, %v528
    %v1262 = vpack.c.bf16 %v538, %v530
    %v1263 = vpack.c.bf16 %v540, %v532
    %v1264 = vpack.c.bf16 %v542, %v534
    %v1265 = vpack.c.bf16 %v552, %v544
    %v1266 = vpack.c.bf16 %v554, %v546
    %v1267 = vpack.c.bf16 %v556, %v548
    %v1268 = vpack.c.bf16 %v558, %v550
    %v1269 = vpack.c.bf16 %v560, %v560
    %v1270 = vpack.c.bf16 %v562, %v562
    %v1271 = vpack.c.bf16 %v564, %v564
    %v1272 = vpack.c.bf16 %v566, %v566
    %v1401 = vunpack.c.l.b16 %v1093
    %v1402 = vunpack.c.h.b16 %v1093
    %v1403 = vunpack.c.l.b16 %v1094
    %v1404 = vunpack.c.h.b16 %v1094
    %v1405 = vunpack.c.l.b16 %v1095
    %v1406 = vunpack.c.h.b16 %v1095
    %v1407 = vunpack.c.l.b16 %v1096
    %v1408 = vunpack.c.h.b16 %v1096
    %v1409 = vunpack.c.l.b16 %v1097
    %v1410 = vunpack.c.h.b16 %v1097
    %v1411 = vunpack.c.l.b16 %v1098
    %v1412 = vunpack.c.h.b16 %v1098
    %v1413 = vunpack.c.l.b16 %v1099
    %v1414 = vunpack.c.h.b16 %v1099
    %v1415 = vunpack.c.l.b16 %v1100
    %v1416 = vunpack.c.h.b16 %v1100
    %v1417 = vunpack.c.l.b16 %v1101
    %v1418 = vunpack.c.h.b16 %v1101
    %v1419 = vunpack.c.l.b16 %v1102
    %v1420 = vunpack.c.h.b16 %v1102
    %v1421 = vunpack.c.l.b16 %v1103
    %v1422 = vunpack.c.h.b16 %v1103
    %v1423 = vunpack.c.l.b16 %v1104
    %v1424 = vunpack.c.h.b16 %v1104
    %v1425 = vunpack.c.l.b16 %v1105
    %v1426 = vunpack.c.h.b16 %v1105
    %v1427 = vunpack.c.l.b16 %v1106
    %v1428 = vunpack.c.h.b16 %v1106
    %v1429 = vunpack.c.l.b16 %v1107
    %v1430 = vunpack.c.h.b16 %v1107
    %v1431 = vunpack.c.l.b16 %v1108
    %v1432 = vunpack.c.h.b16 %v1108
    %v1433 = vunpack.c.l.b16 %v1109
    %v1434 = vunpack.c.h.b16 %v1109
    %v1435 = vunpack.c.l.b16 %v1110
    %v1436 = vunpack.c.h.b16 %v1110
    %v1437 = vunpack.c.l.b16 %v1111
    %v1438 = vunpack.c.h.b16 %v1111
    %v1439 = vunpack.c.l.b16 %v1112
    %v1440 = vunpack.c.h.b16 %v1112
    %v1441 = vunpack.c.l.b16 %v1113
    %v1442 = vunpack.c.h.b16 %v1113
    %v1443 = vunpack.c.l.b16 %v1114
    %v1444 = vunpack.c.h.b16 %v1114
    %v1445 = vunpack.c.l.b16 %v1115
    %v1446 = vunpack.c.h.b16 %v1115
    %v1447 = vunpack.c.l.b16 %v1116
    %v1448 = vunpack.c.h.b16 %v1116
    %v1449 = vunpack.c.l.b16 %v1117
    %v1450 = vunpack.c.h.b16 %v1117
    %v1451 = vunpack.c.l.b16 %v1118
    %v1452 = vunpack.c.h.b16 %v1118
    %v1453 = vunpack.c.l.b16 %v1119
    %v1454 = vunpack.c.h.b16 %v1119
    %v1455 = vunpack.c.l.b16 %v1120
    %v1456 = vunpack.c.h.b16 %v1120
    %v1457 = vunpack.c.l.b16 %v1121
    %v1458 = vunpack.c.h.b16 %v1121
    %v1459 = vunpack.c.l.b16 %v1122
    %v1460 = vunpack.c.h.b16 %v1122
    %v1461 = vunpack.c.l.b16 %v1123
    %v1462 = vunpack.c.h.b16 %v1123
    %v1463 = vunpack.c.l.b16 %v1124
    %v1464 = vunpack.c.h.b16 %v1124
    %v1465 = vunpack.c.l.b16 %v1125
    %v1466 = vunpack.c.h.b16 %v1125
    %v1467 = vunpack.c.l.b16 %v1126
    %v1468 = vunpack.c.h.b16 %v1126
    %v1469 = vunpack.c.l.b16 %v1127
    %v1470 = vunpack.c.h.b16 %v1127
    %v1471 = vunpack.c.l.b16 %v1128
    %v1472 = vunpack.c.h.b16 %v1128
    %v1473 = vunpack.c.l.b16 %v1129
    %v1474 = vunpack.c.h.b16 %v1129
    %v1475 = vunpack.c.l.b16 %v1130
    %v1476 = vunpack.c.h.b16 %v1130
    %v1477 = vunpack.c.l.b16 %v1131
    %v1478 = vunpack.c.h.b16 %v1131
    %v1479 = vunpack.c.l.b16 %v1132
    %v1480 = vunpack.c.h.b16 %v1132
    %v1481 = vunpack.c.l.b16 %v1133
    %v1482 = vunpack.c.h.b16 %v1133
    %v1483 = vunpack.c.l.b16 %v1134
    %v1484 = vunpack.c.h.b16 %v1134
    %v1485 = vunpack.c.l.b16 %v1135
    %v1486 = vunpack.c.h.b16 %v1135
    %v1487 = vunpack.c.l.b16 %v1136
    %v1488 = vunpack.c.h.b16 %v1136
    %v1489 = vunpack.c.l.b16 %v1137
    %v1490 = vunpack.c.h.b16 %v1137
    %v1491 = vunpack.c.l.b16 %v1138
    %v1492 = vunpack.c.h.b16 %v1138
    %v1493 = vunpack.c.l.b16 %v1139
    %v1494 = vunpack.c.h.b16 %v1139
    %v1495 = vunpack.c.l.b16 %v1140
    %v1496 = vunpack.c.h.b16 %v1140
    %v1497 = vunpack.c.l.b16 %v1141
    %v1498 = vunpack.c.h.b16 %v1141
    %v1499 = vunpack.c.l.b16 %v1142
    %v1500 = vunpack.c.h.b16 %v1142
    %v1501 = vunpack.c.l.b16 %v1143
    %v1502 = vunpack.c.h.b16 %v1143
    %v1503 = vunpack.c.l.b16 %v1144
    %v1504 = vunpack.c.h.b16 %v1144
    %v1505 = vunpack.c.l.b16 %v1145
    %v1506 = vunpack.c.h.b16 %v1145
    %v1507 = vunpack.c.l.b16 %v1146
    %v1508 = vunpack.c.h.b16 %v1146
    %v1509 = vunpack.c.l.b16 %v1147
    %v1510 = vunpack.c.h.b16 %v1147
    %v1511 = vunpack.c.l.b16 %v1148
    %v1512 = vunpack.c.h.b16 %v1148
    %v1513 = vunpack.c.l.b16 %v1149
    %v1514 = vunpack.c.h.b16 %v1149
    %v1515 = vunpack.c.l.b16 %v1150
    %v1516 = vunpack.c.h.b16 %v1150
    %v1517 = vunpack.c.l.b16 %v1151
    %v1518 = vunpack.c.h.b16 %v1151
    %v1519 = vunpack.c.l.b16 %v1152
    %v1520 = vunpack.c.h.b16 %v1152
    %v1521 = vunpack.c.l.b16 %v1153
    %v1522 = vunpack.c.h.b16 %v1153
    %v1523 = vunpack.c.l.b16 %v1154
    %v1524 = vunpack.c.h.b16 %v1154
    %v1525 = vunpack.c.l.b16 %v1155
    %v1526 = vunpack.c.h.b16 %v1155
    %v1527 = vunpack.c.l.b16 %v1156
    %v1528 = vunpack.c.h.b16 %v1156
    %v1529 = vunpack.c.l.b16 %v1157
    %v1530 = vunpack.c.h.b16 %v1157
    %v1531 = vunpack.c.l.b16 %v1158
    %v1532 = vunpack.c.h.b16 %v1158
    %v1533 = vunpack.c.l.b16 %v1159
    %v1534 = vunpack.c.h.b16 %v1159
    %v1535 = vunpack.c.l.b16 %v1160
    %v1536 = vunpack.c.h.b16 %v1160
    %v1537 = vunpack.c.l.b16 %v1161
    %v1538 = vunpack.c.h.b16 %v1161
    %v1539 = vunpack.c.l.b16 %v1162
    %v1540 = vunpack.c.h.b16 %v1162
    %v1541 = vunpack.c.l.b16 %v1163
    %v1542 = vunpack.c.h.b16 %v1163
    %v1543 = vunpack.c.l.b16 %v1164
    %v1544 = vunpack.c.h.b16 %v1164
    %v1545 = vunpack.c.l.b16 %v1165
    %v1546 = vunpack.c.h.b16 %v1165
    %v1547 = vunpack.c.l.b16 %v1166
    %v1548 = vunpack.c.h.b16 %v1166
    %v1549 = vunpack.c.l.b16 %v1167
    %v1550 = vunpack.c.h.b16 %v1167
    %v1551 = vunpack.c.l.b16 %v1168
    %v1552 = vunpack.c.h.b16 %v1168
    %v1553 = vunpack.c.l.b16 %v1169
    %v1554 = vunpack.c.h.b16 %v1169
    %v1555 = vunpack.c.l.b16 %v1170
    %v1556 = vunpack.c.h.b16 %v1170
    %v1557 = vunpack.c.l.b16 %v1171
    %v1558 = vunpack.c.h.b16 %v1171
    %v1559 = vunpack.c.l.b16 %v1172
    %v1560 = vunpack.c.h.b16 %v1172
    %v1561 = vunpack.c.l.b16 %v1173
    %v1562 = vunpack.c.h.b16 %v1173
    %v1563 = vunpack.c.l.b16 %v1174
    %v1564 = vunpack.c.h.b16 %v1174
    %v1565 = vunpack.c.l.b16 %v1175
    %v1566 = vunpack.c.h.b16 %v1175
    %v1567 = vunpack.c.l.b16 %v1176
    %v1568 = vunpack.c.h.b16 %v1176
    %v1569 = vunpack.c.l.b16 %v1177
    %v1570 = vunpack.c.h.b16 %v1177
    %v1571 = vunpack.c.l.b16 %v1178
    %v1572 = vunpack.c.h.b16 %v1178
    %v1573 = vunpack.c.l.b16 %v1179
    %v1574 = vunpack.c.h.b16 %v1179
    %v1575 = vunpack.c.l.b16 %v1180
    %v1576 = vunpack.c.h.b16 %v1180
    %v1577 = vunpack.c.l.b16 %v1181
    %v1578 = vunpack.c.h.b16 %v1181
    %v1579 = vunpack.c.l.b16 %v1182
    %v1580 = vunpack.c.h.b16 %v1182
    %v1581 = vunpack.c.l.b16 %v1183
    %v1582 = vunpack.c.h.b16 %v1183
    %v1583 = vunpack.c.l.b16 %v1184
    %v1584 = vunpack.c.h.b16 %v1184
    %v1585 = vunpack.c.l.b16 %v1185
    %v1586 = vunpack.c.h.b16 %v1185
    %v1587 = vunpack.c.l.b16 %v1186
    %v1588 = vunpack.c.h.b16 %v1186
    %v1589 = vunpack.c.l.b16 %v1187
    %v1590 = vunpack.c.h.b16 %v1187
    %v1591 = vunpack.c.l.b16 %v1188
    %v1592 = vunpack.c.h.b16 %v1188
    %v1593 = vunpack.c.l.b16 %v1189
    %v1594 = vunpack.c.h.b16 %v1189
    %v1595 = vunpack.c.l.b16 %v1190
    %v1596 = vunpack.c.h.b16 %v1190
    %v1597 = vunpack.c.l.b16 %v1191
    %v1598 = vunpack.c.h.b16 %v1191
    %v1599 = vunpack.c.l.b16 %v1192
    %v1600 = vunpack.c.h.b16 %v1192
    %v1601 = vunpack.c.l.b16 %v1193
    %v1602 = vunpack.c.h.b16 %v1193
    %v1603 = vunpack.c.l.b16 %v1194
    %v1604 = vunpack.c.h.b16 %v1194
    %v1605 = vunpack.c.l.b16 %v1195
    %v1606 = vunpack.c.h.b16 %v1195
    %v1607 = vunpack.c.l.b16 %v1196
    %v1608 = vunpack.c.h.b16 %v1196
    %v1609 = vunpack.c.l.b16 %v1197
    %v1610 = vunpack.c.h.b16 %v1197
    %v1611 = vunpack.c.l.b16 %v1198
    %v1612 = vunpack.c.h.b16 %v1198
    %v1613 = vunpack.c.l.b16 %v1199
    %v1614 = vunpack.c.h.b16 %v1199
    %v1615 = vunpack.c.l.b16 %v1200
    %v1616 = vunpack.c.h.b16 %v1200
    %v1617 = vunpack.c.l.b16 %v1201
    %v1618 = vunpack.c.h.b16 %v1201
    %v1619 = vunpack.c.l.b16 %v1202
    %v1620 = vunpack.c.h.b16 %v1202
    %v1621 = vunpack.c.l.b16 %v1203
    %v1622 = vunpack.c.h.b16 %v1203
    %v1623 = vunpack.c.l.b16 %v1204
    %v1624 = vunpack.c.h.b16 %v1204
    %v1625 = vunpack.c.l.b16 %v1205
    %v1626 = vunpack.c.h.b16 %v1205
    %v1627 = vunpack.c.l.b16 %v1206
    %v1628 = vunpack.c.h.b16 %v1206
    %v1629 = vunpack.c.l.b16 %v1207
    %v1630 = vunpack.c.h.b16 %v1207
    %v1631 = vunpack.c.l.b16 %v1208
    %v1632 = vunpack.c.h.b16 %v1208
    %v1633 = vunpack.c.l.b16 %v1209
    %v1634 = vunpack.c.h.b16 %v1209
    %v1635 = vunpack.c.l.b16 %v1210
    %v1636 = vunpack.c.h.b16 %v1210
    %v1637 = vunpack.c.l.b16 %v1211
    %v1638 = vunpack.c.h.b16 %v1211
    %v1639 = vunpack.c.l.b16 %v1212
    %v1640 = vunpack.c.h.b16 %v1212
    %v1641 = vunpack.c.l.b16 %v1213
    %v1642 = vunpack.c.h.b16 %v1213
    %v1643 = vunpack.c.l.b16 %v1214
    %v1644 = vunpack.c.h.b16 %v1214
    %v1645 = vunpack.c.l.b16 %v1215
    %v1646 = vunpack.c.h.b16 %v1215
    %v1647 = vunpack.c.l.b16 %v1216
    %v1648 = vunpack.c.h.b16 %v1216
    %v1649 = vunpack.c.l.b16 %v1217
    %v1650 = vunpack.c.h.b16 %v1217
    %v1651 = vunpack.c.l.b16 %v1218
    %v1652 = vunpack.c.h.b16 %v1218
    %v1653 = vunpack.c.l.b16 %v1219
    %v1654 = vunpack.c.h.b16 %v1219
    %v1655 = vunpack.c.l.b16 %v1220
    %v1656 = vunpack.c.h.b16 %v1220
    %v1657 = vpack.c.b16 %v1405, %v1401
    %v1658 = vpack.c.b16 %v1406, %v1402
    %v1659 = vpack.c.b16 %v1407, %v1403
    %v1660 = vpack.c.b16 %v1408, %v1404
    %v1661 = vpack.c.b16 %v1413, %v1409
    %v1662 = vpack.c.b16 %v1414, %v1410
    %v1663 = vpack.c.b16 %v1415, %v1411
    %v1664 = vpack.c.b16 %v1416, %v1412
    %v1665 = vpack.c.b16 %v1421, %v1417
    %v1666 = vpack.c.b16 %v1422, %v1418
    %v1667 = vpack.c.b16 %v1423, %v1419
    %v1668 = vpack.c.b16 %v1424, %v1420
    %v1669 = vpack.c.b16 %v1429, %v1425
    %v1670 = vpack.c.b16 %v1430, %v1426
    %v1671 = vpack.c.b16 %v1431, %v1427
    %v1672 = vpack.c.b16 %v1432, %v1428
    %v1673 = vpack.c.b16 %v1437, %v1433
    %v1674 = vpack.c.b16 %v1438, %v1434
    %v1675 = vpack.c.b16 %v1439, %v1435
    %v1676 = vpack.c.b16 %v1440, %v1436
    %v1677 = vpack.c.b16 %v1445, %v1441
    %v1678 = vpack.c.b16 %v1446, %v1442
    %v1679 = vpack.c.b16 %v1447, %v1443
    %v1680 = vpack.c.b16 %v1448, %v1444
    %v1681 = vpack.c.b16 %v1453, %v1449
    %v1682 = vpack.c.b16 %v1454, %v1450
    %v1683 = vpack.c.b16 %v1455, %v1451
    %v1684 = vpack.c.b16 %v1456, %v1452
    %v1685 = vpack.c.b16 %v1461, %v1457
    %v1686 = vpack.c.b16 %v1462, %v1458
    %v1687 = vpack.c.b16 %v1463, %v1459
    %v1688 = vpack.c.b16 %v1464, %v1460
    %v1689 = vpack.c.b16 %v1469, %v1465
    %v1690 = vpack.c.b16 %v1470, %v1466
    %v1691 = vpack.c.b16 %v1471, %v1467
    %v1692 = vpack.c.b16 %v1472, %v1468
    %v1693 = vpack.c.b16 %v1477, %v1473
    %v1694 = vpack.c.b16 %v1478, %v1474
    %v1695 = vpack.c.b16 %v1479, %v1475
    %v1696 = vpack.c.b16 %v1480, %v1476
    %v1697 = vpack.c.b16 %v1485, %v1481
    %v1698 = vpack.c.b16 %v1486, %v1482
    %v1699 = vpack.c.b16 %v1487, %v1483
    %v1700 = vpack.c.b16 %v1488, %v1484
    %v1701 = vpack.c.b16 %v1493, %v1489
    %v1702 = vpack.c.b16 %v1494, %v1490
    %v1703 = vpack.c.b16 %v1495, %v1491
    %v1704 = vpack.c.b16 %v1496, %v1492
    %v1705 = vpack.c.b16 %v1501, %v1497
    %v1706 = vpack.c.b16 %v1502, %v1498
    %v1707 = vpack.c.b16 %v1503, %v1499
    %v1708 = vpack.c.b16 %v1504, %v1500
    %v1709 = vpack.c.b16 %v1509, %v1505
    %v1710 = vpack.c.b16 %v1510, %v1506
    %v1711 = vpack.c.b16 %v1511, %v1507
    %v1712 = vpack.c.b16 %v1512, %v1508
    %v1713 = vpack.c.b16 %v1517, %v1513
    %v1714 = vpack.c.b16 %v1518, %v1514
    %v1715 = vpack.c.b16 %v1519, %v1515
    %v1716 = vpack.c.b16 %v1520, %v1516
    %v1717 = vpack.c.b16 %v1525, %v1521
    %v1718 = vpack.c.b16 %v1526, %v1522
    %v1719 = vpack.c.b16 %v1527, %v1523
    %v1720 = vpack.c.b16 %v1528, %v1524
    %v1721 = vpack.c.b16 %v1533, %v1529
    %v1722 = vpack.c.b16 %v1534, %v1530
    %v1723 = vpack.c.b16 %v1535, %v1531
    %v1724 = vpack.c.b16 %v1536, %v1532
    %v1725 = vpack.c.b16 %v1541, %v1537
    %v1726 = vpack.c.b16 %v1542, %v1538
    %v1727 = vpack.c.b16 %v1543, %v1539
    %v1728 = vpack.c.b16 %v1544, %v1540
    %v1729 = vpack.c.b16 %v1549, %v1545
    %v1730 = vpack.c.b16 %v1550, %v1546
    %v1731 = vpack.c.b16 %v1551, %v1547
    %v1732 = vpack.c.b16 %v1552, %v1548
    %v1733 = vpack.c.b16 %v1557, %v1553
    %v1734 = vpack.c.b16 %v1558, %v1554
    %v1735 = vpack.c.b16 %v1559, %v1555
    %v1736 = vpack.c.b16 %v1560, %v1556
    %v1737 = vpack.c.b16 %v1565, %v1561
    %v1738 = vpack.c.b16 %v1566, %v1562
    %v1739 = vpack.c.b16 %v1567, %v1563
    %v1740 = vpack.c.b16 %v1568, %v1564
    %v1741 = vpack.c.b16 %v1573, %v1569
    %v1742 = vpack.c.b16 %v1574, %v1570
    %v1743 = vpack.c.b16 %v1575, %v1571
    %v1744 = vpack.c.b16 %v1576, %v1572
    %v1745 = vpack.c.b16 %v1581, %v1577
    %v1746 = vpack.c.b16 %v1582, %v1578
    %v1747 = vpack.c.b16 %v1583, %v1579
    %v1748 = vpack.c.b16 %v1584, %v1580
    %v1749 = vpack.c.b16 %v1589, %v1585
    %v1750 = vpack.c.b16 %v1590, %v1586
    %v1751 = vpack.c.b16 %v1591, %v1587
    %v1752 = vpack.c.b16 %v1592, %v1588
    %v1753 = vpack.c.b16 %v1597, %v1593
    %v1754 = vpack.c.b16 %v1598, %v1594
    %v1755 = vpack.c.b16 %v1599, %v1595
    %v1756 = vpack.c.b16 %v1600, %v1596
    %v1757 = vpack.c.b16 %v1605, %v1601
    %v1758 = vpack.c.b16 %v1606, %v1602
    %v1759 = vpack.c.b16 %v1607, %v1603
    %v1760 = vpack.c.b16 %v1608, %v1604
    %v1761 = vpack.c.b16 %v1613, %v1609
    %v1762 = vpack.c.b16 %v1614, %v1610
    %v1763 = vpack.c.b16 %v1615, %v1611
    %v1764 = vpack.c.b16 %v1616, %v1612
    %v1765 = vpack.c.b16 %v1621, %v1617
    %v1766 = vpack.c.b16 %v1622, %v1618
    %v1767 = vpack.c.b16 %v1623, %v1619
    %v1768 = vpack.c.b16 %v1624, %v1620
    %v1769 = vpack.c.b16 %v1629, %v1625
    %v1770 = vpack.c.b16 %v1630, %v1626
    %v1771 = vpack.c.b16 %v1631, %v1627
    %v1772 = vpack.c.b16 %v1632, %v1628
    %v1773 = vpack.c.b16 %v1637, %v1633
    %v1774 = vpack.c.b16 %v1638, %v1634
    %v1775 = vpack.c.b16 %v1639, %v1635
    %v1776 = vpack.c.b16 %v1640, %v1636
    %v1777 = vpack.c.b16 %v1645, %v1641
    %v1778 = vpack.c.b16 %v1646, %v1642
    %v1779 = vpack.c.b16 %v1647, %v1643
    %v1780 = vpack.c.b16 %v1648, %v1644
    %v1781 = vpack.c.b16 %v1653, %v1649
    %v1782 = vpack.c.b16 %v1654, %v1650
    %v1783 = vpack.c.b16 %v1655, %v1651
    %v1784 = vpack.c.b16 %v1656, %v1652
    %1913 = vmatprep.subr.bf16.mxu0 %v1686
    %1914 = vmatpush1.bf16.msra.mxu0 %v1685
    %1915 = vmatprep.subr.bf16.mxu0 %v1682
    %1916 = vmatpush1.bf16.msra.mxu0 %v1681
    %1917 = vmatprep.subr.bf16.mxu0 %v1678
    %1918 = vmatpush1.bf16.msra.mxu0 %v1677
    %1919 = vmatprep.subr.bf16.mxu0 %v1674
    %1920 = vmatpush1.bf16.msra.mxu0 %v1673
    %1921 = vmatprep.subr.bf16.mxu0 %v1670
    %1922 = vmatpush1.bf16.msra.mxu0 %v1669
    %1923 = vmatprep.subr.bf16.mxu0 %v1666
    %1924 = vmatpush1.bf16.msra.mxu0 %v1665
    %1925 = vmatprep.subr.bf16.mxu0 %v1662
    %1926 = vmatpush1.bf16.msra.mxu0 %v1661
    %1927 = vmatprep.subr.bf16.mxu0 %v1658
    %1928 = vmatpush1.bf16.msra.mxu0 %v1657
    %1929 = vmatprep.subr.bf16.mxu0 %v1718
    %1930 = vmatpush2.bf16.msra.mxu0 %v1717
    %1931 = vmatprep.subr.bf16.mxu0 %v1714
    %1932 = vmatpush2.bf16.msra.mxu0 %v1713
    %1933 = vmatprep.subr.bf16.mxu0 %v1710
    %1934 = vmatpush2.bf16.msra.mxu0 %v1709
    %1935 = vmatprep.subr.bf16.mxu0 %v1706
    %1936 = vmatpush2.bf16.msra.mxu0 %v1705
    %1937 = vmatprep.subr.bf16.mxu0 %v1702
    %1938 = vmatpush2.bf16.msra.mxu0 %v1701
    %1939 = vmatprep.subr.bf16.mxu0 %v1698
    %1940 = vmatpush2.bf16.msra.mxu0 %v1697
    %1941 = vmatprep.subr.bf16.mxu0 %v1694
    %1942 = vmatpush2.bf16.msra.mxu0 %v1693
    %1943 = vmatprep.subr.bf16.mxu0 %v1690
    %1944 = vmatpush2.bf16.msra.mxu0 %v1689
    %1945 = vmatprep.mubr.bf16.mxu0 %v1222
    %1946 = vmatmul.mubr.bf16.gmra.mxu0 %v1221
    %v1947 = vpop.f32.mrf.mxu0
    %v1948 = vadd.f32 0.0, %v1947
    %v1949 = vpop.f32.mrf.mxu0
    %v1950 = vadd.f32 0.0, %v1949
    %v1951 = vpop.f32.mrf.mxu0
    %v1952 = vadd.f32 0.0, %v1951
    %v1953 = vpop.f32.mrf.mxu0
    %v1954 = vadd.f32 0.0, %v1953
    %1955 = vmatprep.mubr.bf16.mxu0 %v1226
    %1956 = vmatmul.mubr.bf16.gmra.mxu0 %v1225
    %v1957 = vpop.f32.mrf.mxu0
    %v1958 = vadd.f32 0.0, %v1957
    %v1959 = vpop.f32.mrf.mxu0
    %v1960 = vadd.f32 0.0, %v1959
    %v1961 = vpop.f32.mrf.mxu0
    %v1962 = vadd.f32 0.0, %v1961
    %v1963 = vpop.f32.mrf.mxu0
    %v1964 = vadd.f32 0.0, %v1963
    %1965 = vmatprep.mubr.bf16.mxu0 %v1230
    %1966 = vmatmul.mubr.bf16.gmra.mxu0 %v1229
    %v1967 = vpop.f32.mrf.mxu0
    %v1968 = vadd.f32 0.0, %v1967
    %v1969 = vpop.f32.mrf.mxu0
    %v1970 = vadd.f32 0.0, %v1969
    %v1971 = vpop.f32.mrf.mxu0
    %v1972 = vadd.f32 0.0, %v1971
    %v1973 = vpop.f32.mrf.mxu0
    %v1974 = vadd.f32 0.0, %v1973
    %1975 = vmatprep.mubr.bf16.mxu0 %v1234
    %1976 = vmatmul.mubr.bf16.gmra.mxu0 %v1233
    %v1977 = vpop.f32.mrf.mxu0
    %v1978 = vadd.f32 0.0, %v1977
    %v1979 = vpop.f32.mrf.mxu0
    %v1980 = vadd.f32 0.0, %v1979
    %v1981 = vpop.f32.mrf.mxu0
    %v1982 = vadd.f32 0.0, %v1981
    %v1983 = vpop.f32.mrf.mxu0
    %v1984 = vadd.f32 0.0, %v1983
    %1985 = vmatprep.mubr.bf16.mxu0 %v1238
    %1986 = vmatmul.mubr.bf16.gmra.mxu0 %v1237
    %v1987 = vpop.f32.mrf.mxu0
    %v1988 = vadd.f32 0.0, %v1987
    %v1989 = vpop.f32.mrf.mxu0
    %v1990 = vadd.f32 0.0, %v1989
    %v1991 = vpop.f32.mrf.mxu0
    %v1992 = vadd.f32 0.0, %v1991
    %v1993 = vpop.f32.mrf.mxu0
    %v1994 = vadd.f32 0.0, %v1993
    %1995 = vmatprep.mubr.bf16.mxu0 %v1242
    %1996 = vmatmul.mubr.bf16.gmra.mxu0 %v1241
    %v1997 = vpop.f32.mrf.mxu0
    %v1998 = vadd.f32 0.0, %v1997
    %v1999 = vpop.f32.mrf.mxu0
    %v2000 = vadd.f32 0.0, %v1999
    %v2001 = vpop.f32.mrf.mxu0
    %v2002 = vadd.f32 0.0, %v2001
    %v2003 = vpop.f32.mrf.mxu0
    %v2004 = vadd.f32 0.0, %v2003
    %2005 = vmatprep.mubr.bf16.mxu0 %v1246
    %2006 = vmatmul.mubr.bf16.gmra.mxu0 %v1245
    %v2007 = vpop.f32.mrf.mxu0
    %v2008 = vadd.f32 0.0, %v2007
    %v2009 = vpop.f32.mrf.mxu0
    %v2010 = vadd.f32 0.0, %v2009
    %v2011 = vpop.f32.mrf.mxu0
    %v2012 = vadd.f32 0.0, %v2011
    %v2013 = vpop.f32.mrf.mxu0
    %v2014 = vadd.f32 0.0, %v2013
    %2015 = vmatprep.mubr.bf16.mxu0 %v1250
    %2016 = vmatmul.mubr.bf16.gmra.mxu0 %v1249
    %v2017 = vpop.f32.mrf.mxu0
    %v2018 = vadd.f32 0.0, %v2017
    %v2019 = vpop.f32.mrf.mxu0
    %v2020 = vadd.f32 0.0, %v2019
    %v2021 = vpop.f32.mrf.mxu0
    %v2022 = vadd.f32 0.0, %v2021
    %v2023 = vpop.f32.mrf.mxu0
    %v2024 = vadd.f32 0.0, %v2023
    %2025 = vmatprep.mubr.bf16.mxu0 %v1254
    %2026 = vmatmul.mubr.bf16.gmra.mxu0 %v1253
    %v2027 = vpop.f32.mrf.mxu0
    %v2028 = vadd.f32 0.0, %v2027
    %v2029 = vpop.f32.mrf.mxu0
    %v2030 = vadd.f32 0.0, %v2029
    %v2031 = vpop.f32.mrf.mxu0
    %v2032 = vadd.f32 0.0, %v2031
    %v2033 = vpop.f32.mrf.mxu0
    %v2034 = vadd.f32 0.0, %v2033
    %2035 = vmatprep.mubr.bf16.mxu0 %v1258
    %2036 = vmatmul.mubr.bf16.gmra.mxu0 %v1257
    %v2037 = vpop.f32.mrf.mxu0
    %v2038 = vadd.f32 0.0, %v2037
    %v2039 = vpop.f32.mrf.mxu0
    %v2040 = vadd.f32 0.0, %v2039
    %v2041 = vpop.f32.mrf.mxu0
    %v2042 = vadd.f32 0.0, %v2041
    %v2043 = vpop.f32.mrf.mxu0
    %v2044 = vadd.f32 0.0, %v2043
    %2045 = vmatprep.mubr.bf16.mxu0 %v1262
    %2046 = vmatmul.mubr.bf16.gmra.mxu0 %v1261
    %v2047 = vpop.f32.mrf.mxu0
    %v2048 = vadd.f32 0.0, %v2047
    %v2049 = vpop.f32.mrf.mxu0
    %v2050 = vadd.f32 0.0, %v2049
    %v2051 = vpop.f32.mrf.mxu0
    %v2052 = vadd.f32 0.0, %v2051
    %v2053 = vpop.f32.mrf.mxu0
    %v2054 = vadd.f32 0.0, %v2053
    %2055 = vmatprep.mubr.bf16.mxu0 %v1266
    %2056 = vmatmul.mubr.bf16.gmra.mxu0 %v1265
    %v2057 = vpop.f32.mrf.mxu0
    %v2058 = vadd.f32 0.0, %v2057
    %v2059 = vpop.f32.mrf.mxu0
    %v2060 = vadd.f32 0.0, %v2059
    %v2061 = vpop.f32.mrf.mxu0
    %v2062 = vadd.f32 0.0, %v2061
    %v2063 = vpop.f32.mrf.mxu0
    %v2064 = vadd.f32 0.0, %v2063
    %2065 = vmatprep.mubr.bf16.mxu0 %v1270
    %2066 = vmatmul.mubr.bf16.gmra.mxu0 %v1269
    %v2067 = vpop.f32.mrf.mxu0
    %v2068 = vadd.f32 0.0, %v2067
    %v2069 = vpop.f32.mrf.mxu0
    %v2070 = vadd.f32 0.0, %v2069
    %v2071 = vpop.f32.mrf.mxu0
    %v2072 = vpop.f32.mrf.mxu0
    %2073 = vdwg.mxu0
    %2074 = vmatprep.subr.bf16.mxu0 %v1750
    %2075 = vmatpush1.bf16.msra.mxu0 %v1749
    %2076 = vmatprep.subr.bf16.mxu0 %v1746
    %2077 = vmatpush1.bf16.msra.mxu0 %v1745
    %2078 = vmatprep.subr.bf16.mxu0 %v1742
    %2079 = vmatpush1.bf16.msra.mxu0 %v1741
    %2080 = vmatprep.subr.bf16.mxu0 %v1738
    %2081 = vmatpush1.bf16.msra.mxu0 %v1737
    %2082 = vmatprep.subr.bf16.mxu0 %v1734
    %2083 = vmatpush1.bf16.msra.mxu0 %v1733
    %2084 = vmatprep.subr.bf16.mxu0 %v1730
    %2085 = vmatpush1.bf16.msra.mxu0 %v1729
    %2086 = vmatprep.subr.bf16.mxu0 %v1726
    %2087 = vmatpush1.bf16.msra.mxu0 %v1725
    %2088 = vmatprep.subr.bf16.mxu0 %v1722
    %2089 = vmatpush1.bf16.msra.mxu0 %v1721
    %2090 = vmatprep.subr.bf16.mxu0 %v1782
    %2091 = vmatpush2.bf16.msra.mxu0 %v1781
    %2092 = vmatprep.subr.bf16.mxu0 %v1778
    %2093 = vmatpush2.bf16.msra.mxu0 %v1777
    %2094 = vmatprep.subr.bf16.mxu0 %v1774
    %2095 = vmatpush2.bf16.msra.mxu0 %v1773
    %2096 = vmatprep.subr.bf16.mxu0 %v1770
    %2097 = vmatpush2.bf16.msra.mxu0 %v1769
    %2098 = vmatprep.subr.bf16.mxu0 %v1766
    %2099 = vmatpush2.bf16.msra.mxu0 %v1765
    %2100 = vmatprep.subr.bf16.mxu0 %v1762
    %2101 = vmatpush2.bf16.msra.mxu0 %v1761
    %2102 = vmatprep.subr.bf16.mxu0 %v1758
    %2103 = vmatpush2.bf16.msra.mxu0 %v1757
    %2104 = vmatprep.subr.bf16.mxu0 %v1754
    %2105 = vmatpush2.bf16.msra.mxu0 %v1753
    %2106 = vmatprep.mubr.bf16.mxu0 %v1224
    %2107 = vmatmul.mubr.bf16.gmra.mxu0 %v1223
    %v2108 = vpop.f32.mrf.mxu0
    %v2109 = vadd.f32 %v1948, %v2108
    %v2110 = vpop.f32.mrf.mxu0
    %v2111 = vadd.f32 %v1950, %v2110
    %v2112 = vpop.f32.mrf.mxu0
    %v2113 = vadd.f32 %v1952, %v2112
    %v2114 = vpop.f32.mrf.mxu0
    %v2115 = vadd.f32 %v1954, %v2114
    %2116 = vmatprep.mubr.bf16.mxu0 %v1228
    %2117 = vmatmul.mubr.bf16.gmra.mxu0 %v1227
    %v2118 = vpop.f32.mrf.mxu0
    %v2119 = vadd.f32 %v1958, %v2118
    %v2120 = vpop.f32.mrf.mxu0
    %v2121 = vadd.f32 %v1960, %v2120
    %v2122 = vpop.f32.mrf.mxu0
    %v2123 = vadd.f32 %v1962, %v2122
    %v2124 = vpop.f32.mrf.mxu0
    %v2125 = vadd.f32 %v1964, %v2124
    %2126 = vmatprep.mubr.bf16.mxu0 %v1232
    %2127 = vmatmul.mubr.bf16.gmra.mxu0 %v1231
    %v2128 = vpop.f32.mrf.mxu0
    %v2129 = vadd.f32 %v1968, %v2128
    %v2130 = vpop.f32.mrf.mxu0
    %v2131 = vadd.f32 %v1970, %v2130
    %v2132 = vpop.f32.mrf.mxu0
    %v2133 = vadd.f32 %v1972, %v2132
    %v2134 = vpop.f32.mrf.mxu0
    %v2135 = vadd.f32 %v1974, %v2134
    %2136 = vmatprep.mubr.bf16.mxu0 %v1236
    %2137 = vmatmul.mubr.bf16.gmra.mxu0 %v1235
    %v2138 = vpop.f32.mrf.mxu0
    %v2139 = vadd.f32 %v1978, %v2138
    %v2140 = vpop.f32.mrf.mxu0
    %v2141 = vadd.f32 %v1980, %v2140
    %v2142 = vpop.f32.mrf.mxu0
    %v2143 = vadd.f32 %v1982, %v2142
    %v2144 = vpop.f32.mrf.mxu0
    %v2145 = vadd.f32 %v1984, %v2144
    %2146 = vmatprep.mubr.bf16.mxu0 %v1240
    %2147 = vmatmul.mubr.bf16.gmra.mxu0 %v1239
    %v2148 = vpop.f32.mrf.mxu0
    %v2149 = vadd.f32 %v1988, %v2148
    %v2150 = vpop.f32.mrf.mxu0
    %v2151 = vadd.f32 %v1990, %v2150
    %v2152 = vpop.f32.mrf.mxu0
    %v2153 = vadd.f32 %v1992, %v2152
    %v2154 = vpop.f32.mrf.mxu0
    %v2155 = vadd.f32 %v1994, %v2154
    %2156 = vmatprep.mubr.bf16.mxu0 %v1244
    %2157 = vmatmul.mubr.bf16.gmra.mxu0 %v1243
    %v2158 = vpop.f32.mrf.mxu0
    %v2159 = vadd.f32 %v1998, %v2158
    %v2160 = vpop.f32.mrf.mxu0
    %v2161 = vadd.f32 %v2000, %v2160
    %v2162 = vpop.f32.mrf.mxu0
    %v2163 = vadd.f32 %v2002, %v2162
    %v2164 = vpop.f32.mrf.mxu0
    %v2165 = vadd.f32 %v2004, %v2164
    %2166 = vmatprep.mubr.bf16.mxu0 %v1248
    %2167 = vmatmul.mubr.bf16.gmra.mxu0 %v1247
    %v2168 = vpop.f32.mrf.mxu0
    %v2169 = vadd.f32 %v2008, %v2168
    %v2170 = vpop.f32.mrf.mxu0
    %v2171 = vadd.f32 %v2010, %v2170
    %v2172 = vpop.f32.mrf.mxu0
    %v2173 = vadd.f32 %v2012, %v2172
    %v2174 = vpop.f32.mrf.mxu0
    %v2175 = vadd.f32 %v2014, %v2174
    %2176 = vmatprep.mubr.bf16.mxu0 %v1252
    %2177 = vmatmul.mubr.bf16.gmra.mxu0 %v1251
    %v2178 = vpop.f32.mrf.mxu0
    %v2179 = vadd.f32 %v2018, %v2178
    %v2180 = vpop.f32.mrf.mxu0
    %v2181 = vadd.f32 %v2020, %v2180
    %v2182 = vpop.f32.mrf.mxu0
    %v2183 = vadd.f32 %v2022, %v2182
    %v2184 = vpop.f32.mrf.mxu0
    %v2185 = vadd.f32 %v2024, %v2184
    %2186 = vmatprep.mubr.bf16.mxu0 %v1256
    %2187 = vmatmul.mubr.bf16.gmra.mxu0 %v1255
    %v2188 = vpop.f32.mrf.mxu0
    %v2189 = vadd.f32 %v2028, %v2188
    %v2190 = vpop.f32.mrf.mxu0
    %v2191 = vadd.f32 %v2030, %v2190
    %v2192 = vpop.f32.mrf.mxu0
    %v2193 = vadd.f32 %v2032, %v2192
    %v2194 = vpop.f32.mrf.mxu0
    %v2195 = vadd.f32 %v2034, %v2194
    %2196 = vmatprep.mubr.bf16.mxu0 %v1260
    %2197 = vmatmul.mubr.bf16.gmra.mxu0 %v1259
    %v2198 = vpop.f32.mrf.mxu0
    %v2199 = vadd.f32 %v2038, %v2198
    %v2200 = vpop.f32.mrf.mxu0
    %v2201 = vadd.f32 %v2040, %v2200
    %v2202 = vpop.f32.mrf.mxu0
    %v2203 = vadd.f32 %v2042, %v2202
    %v2204 = vpop.f32.mrf.mxu0
    %v2205 = vadd.f32 %v2044, %v2204
    %2206 = vmatprep.mubr.bf16.mxu0 %v1264
    %2207 = vmatmul.mubr.bf16.gmra.mxu0 %v1263
    %v2208 = vpop.f32.mrf.mxu0
    %v2209 = vadd.f32 %v2048, %v2208
    %v2210 = vpop.f32.mrf.mxu0
    %v2211 = vadd.f32 %v2050, %v2210
    %v2212 = vpop.f32.mrf.mxu0
    %v2213 = vadd.f32 %v2052, %v2212
    %v2214 = vpop.f32.mrf.mxu0
    %v2215 = vadd.f32 %v2054, %v2214
    %2216 = vmatprep.mubr.bf16.mxu0 %v1268
    %2217 = vmatmul.mubr.bf16.gmra.mxu0 %v1267
    %v2218 = vpop.f32.mrf.mxu0
    %v2219 = vadd.f32 %v2058, %v2218
    %v2220 = vpop.f32.mrf.mxu0
    %v2221 = vadd.f32 %v2060, %v2220
    %v2222 = vpop.f32.mrf.mxu0
    %v2223 = vadd.f32 %v2062, %v2222
    %v2224 = vpop.f32.mrf.mxu0
    %v2225 = vadd.f32 %v2064, %v2224
    %2226 = vmatprep.mubr.bf16.mxu0 %v1272
    %2227 = vmatmul.mubr.bf16.gmra.mxu0 %v1271
    %v2228 = vpop.f32.mrf.mxu0
    %v2229 = vadd.f32 %v2068, %v2228
    %v2230 = vpop.f32.mrf.mxu0
    %v2231 = vadd.f32 %v2070, %v2230
    %v2232 = vpop.f32.mrf.mxu0
    %v2233 = vpop.f32.mrf.mxu0
    %2234 = vdwg.mxu0
    %2235 = vmatprep.subr.bf16.mxu0 %v1688
    %2236 = vmatpush1.bf16.msra.mxu0 %v1687
    %2237 = vmatprep.subr.bf16.mxu0 %v1684
    %2238 = vmatpush1.bf16.msra.mxu0 %v1683
    %2239 = vmatprep.subr.bf16.mxu0 %v1680
    %2240 = vmatpush1.bf16.msra.mxu0 %v1679
    %2241 = vmatprep.subr.bf16.mxu0 %v1676
    %2242 = vmatpush1.bf16.msra.mxu0 %v1675
    %2243 = vmatprep.subr.bf16.mxu0 %v1672
    %2244 = vmatpush1.bf16.msra.mxu0 %v1671
    %2245 = vmatprep.subr.bf16.mxu0 %v1668
    %2246 = vmatpush1.bf16.msra.mxu0 %v1667
    %2247 = vmatprep.subr.bf16.mxu0 %v1664
    %2248 = vmatpush1.bf16.msra.mxu0 %v1663
    %2249 = vmatprep.subr.bf16.mxu0 %v1660
    %2250 = vmatpush1.bf16.msra.mxu0 %v1659
    %2251 = vmatprep.subr.bf16.mxu0 %v1720
    %2252 = vmatpush2.bf16.msra.mxu0 %v1719
    %2253 = vmatprep.subr.bf16.mxu0 %v1716
    %2254 = vmatpush2.bf16.msra.mxu0 %v1715
    %2255 = vmatprep.subr.bf16.mxu0 %v1712
    %2256 = vmatpush2.bf16.msra.mxu0 %v1711
    %2257 = vmatprep.subr.bf16.mxu0 %v1708
    %2258 = vmatpush2.bf16.msra.mxu0 %v1707
    %2259 = vmatprep.subr.bf16.mxu0 %v1704
    %2260 = vmatpush2.bf16.msra.mxu0 %v1703
    %2261 = vmatprep.subr.bf16.mxu0 %v1700
    %2262 = vmatpush2.bf16.msra.mxu0 %v1699
    %2263 = vmatprep.subr.bf16.mxu0 %v1696
    %2264 = vmatpush2.bf16.msra.mxu0 %v1695
    %2265 = vmatprep.subr.bf16.mxu0 %v1692
    %2266 = vmatpush2.bf16.msra.mxu0 %v1691
    %2267 = vmatprep.mubr.bf16.mxu0 %v1222
    %2268 = vmatmul.mubr.bf16.gmra.mxu0 %v1221
    %v2269 = vpop.f32.mrf.mxu0
    %v2270 = vadd.f32 0.0, %v2269
    %v2271 = vpop.f32.mrf.mxu0
    %v2272 = vadd.f32 0.0, %v2271
    %v2273 = vpop.f32.mrf.mxu0
    %v2274 = vadd.f32 0.0, %v2273
    %v2275 = vpop.f32.mrf.mxu0
    %v2276 = vadd.f32 0.0, %v2275
    %2277 = vmatprep.mubr.bf16.mxu0 %v1226
    %2278 = vmatmul.mubr.bf16.gmra.mxu0 %v1225
    %v2279 = vpop.f32.mrf.mxu0
    %v2280 = vadd.f32 0.0, %v2279
    %v2281 = vpop.f32.mrf.mxu0
    %v2282 = vadd.f32 0.0, %v2281
    %v2283 = vpop.f32.mrf.mxu0
    %v2284 = vadd.f32 0.0, %v2283
    %v2285 = vpop.f32.mrf.mxu0
    %v2286 = vadd.f32 0.0, %v2285
    %2287 = vmatprep.mubr.bf16.mxu0 %v1230
    %2288 = vmatmul.mubr.bf16.gmra.mxu0 %v1229
    %v2289 = vpop.f32.mrf.mxu0
    %v2290 = vadd.f32 0.0, %v2289
    %v2291 = vpop.f32.mrf.mxu0
    %v2292 = vadd.f32 0.0, %v2291
    %v2293 = vpop.f32.mrf.mxu0
    %v2294 = vadd.f32 0.0, %v2293
    %v2295 = vpop.f32.mrf.mxu0
    %v2296 = vadd.f32 0.0, %v2295
    %2297 = vmatprep.mubr.bf16.mxu0 %v1234
    %2298 = vmatmul.mubr.bf16.gmra.mxu0 %v1233
    %v2299 = vpop.f32.mrf.mxu0
    %v2300 = vadd.f32 0.0, %v2299
    %v2301 = vpop.f32.mrf.mxu0
    %v2302 = vadd.f32 0.0, %v2301
    %v2303 = vpop.f32.mrf.mxu0
    %v2304 = vadd.f32 0.0, %v2303
    %v2305 = vpop.f32.mrf.mxu0
    %v2306 = vadd.f32 0.0, %v2305
    %2307 = vmatprep.mubr.bf16.mxu0 %v1238
    %2308 = vmatmul.mubr.bf16.gmra.mxu0 %v1237
    %v2309 = vpop.f32.mrf.mxu0
    %v2310 = vadd.f32 0.0, %v2309
    %v2311 = vpop.f32.mrf.mxu0
    %v2312 = vadd.f32 0.0, %v2311
    %v2313 = vpop.f32.mrf.mxu0
    %v2314 = vadd.f32 0.0, %v2313
    %v2315 = vpop.f32.mrf.mxu0
    %v2316 = vadd.f32 0.0, %v2315
    %2317 = vmatprep.mubr.bf16.mxu0 %v1242
    %2318 = vmatmul.mubr.bf16.gmra.mxu0 %v1241
    %v2319 = vpop.f32.mrf.mxu0
    %v2320 = vadd.f32 0.0, %v2319
    %v2321 = vpop.f32.mrf.mxu0
    %v2322 = vadd.f32 0.0, %v2321
    %v2323 = vpop.f32.mrf.mxu0
    %v2324 = vadd.f32 0.0, %v2323
    %v2325 = vpop.f32.mrf.mxu0
    %v2326 = vadd.f32 0.0, %v2325
    %2327 = vmatprep.mubr.bf16.mxu0 %v1246
    %2328 = vmatmul.mubr.bf16.gmra.mxu0 %v1245
    %v2329 = vpop.f32.mrf.mxu0
    %v2330 = vadd.f32 0.0, %v2329
    %v2331 = vpop.f32.mrf.mxu0
    %v2332 = vadd.f32 0.0, %v2331
    %v2333 = vpop.f32.mrf.mxu0
    %v2334 = vadd.f32 0.0, %v2333
    %v2335 = vpop.f32.mrf.mxu0
    %v2336 = vadd.f32 0.0, %v2335
    %2337 = vmatprep.mubr.bf16.mxu0 %v1250
    %2338 = vmatmul.mubr.bf16.gmra.mxu0 %v1249
    %v2339 = vpop.f32.mrf.mxu0
    %v2340 = vadd.f32 0.0, %v2339
    %v2341 = vpop.f32.mrf.mxu0
    %v2342 = vadd.f32 0.0, %v2341
    %v2343 = vpop.f32.mrf.mxu0
    %v2344 = vadd.f32 0.0, %v2343
    %v2345 = vpop.f32.mrf.mxu0
    %v2346 = vadd.f32 0.0, %v2345
    %2347 = vmatprep.mubr.bf16.mxu0 %v1254
    %2348 = vmatmul.mubr.bf16.gmra.mxu0 %v1253
    %v2349 = vpop.f32.mrf.mxu0
    %v2350 = vadd.f32 0.0, %v2349
    %v2351 = vpop.f32.mrf.mxu0
    %v2352 = vadd.f32 0.0, %v2351
    %v2353 = vpop.f32.mrf.mxu0
    %v2354 = vadd.f32 0.0, %v2353
    %v2355 = vpop.f32.mrf.mxu0
    %v2356 = vadd.f32 0.0, %v2355
    %2357 = vmatprep.mubr.bf16.mxu0 %v1258
    %2358 = vmatmul.mubr.bf16.gmra.mxu0 %v1257
    %v2359 = vpop.f32.mrf.mxu0
    %v2360 = vadd.f32 0.0, %v2359
    %v2361 = vpop.f32.mrf.mxu0
    %v2362 = vadd.f32 0.0, %v2361
    %v2363 = vpop.f32.mrf.mxu0
    %v2364 = vadd.f32 0.0, %v2363
    %v2365 = vpop.f32.mrf.mxu0
    %v2366 = vadd.f32 0.0, %v2365
    %2367 = vmatprep.mubr.bf16.mxu0 %v1262
    %2368 = vmatmul.mubr.bf16.gmra.mxu0 %v1261
    %v2369 = vpop.f32.mrf.mxu0
    %v2370 = vadd.f32 0.0, %v2369
    %v2371 = vpop.f32.mrf.mxu0
    %v2372 = vadd.f32 0.0, %v2371
    %v2373 = vpop.f32.mrf.mxu0
    %v2374 = vadd.f32 0.0, %v2373
    %v2375 = vpop.f32.mrf.mxu0
    %v2376 = vadd.f32 0.0, %v2375
    %2377 = vmatprep.mubr.bf16.mxu0 %v1266
    %2378 = vmatmul.mubr.bf16.gmra.mxu0 %v1265
    %v2379 = vpop.f32.mrf.mxu0
    %v2380 = vadd.f32 0.0, %v2379
    %v2381 = vpop.f32.mrf.mxu0
    %v2382 = vadd.f32 0.0, %v2381
    %v2383 = vpop.f32.mrf.mxu0
    %v2384 = vadd.f32 0.0, %v2383
    %v2385 = vpop.f32.mrf.mxu0
    %v2386 = vadd.f32 0.0, %v2385
    %2387 = vmatprep.mubr.bf16.mxu0 %v1270
    %2388 = vmatmul.mubr.bf16.gmra.mxu0 %v1269
    %v2389 = vpop.f32.mrf.mxu0
    %v2390 = vadd.f32 0.0, %v2389
    %v2391 = vpop.f32.mrf.mxu0
    %v2392 = vadd.f32 0.0, %v2391
    %v2393 = vpop.f32.mrf.mxu0
    %v2394 = vpop.f32.mrf.mxu0
    %2395 = vdwg.mxu0
    %2396 = vmatprep.subr.bf16.mxu0 %v1752
    %2397 = vmatpush1.bf16.msra.mxu0 %v1751
    %2398 = vmatprep.subr.bf16.mxu0 %v1748
    %2399 = vmatpush1.bf16.msra.mxu0 %v1747
    %2400 = vmatprep.subr.bf16.mxu0 %v1744
    %2401 = vmatpush1.bf16.msra.mxu0 %v1743
    %2402 = vmatprep.subr.bf16.mxu0 %v1740
    %2403 = vmatpush1.bf16.msra.mxu0 %v1739
    %2404 = vmatprep.subr.bf16.mxu0 %v1736
    %2405 = vmatpush1.bf16.msra.mxu0 %v1735
    %2406 = vmatprep.subr.bf16.mxu0 %v1732
    %2407 = vmatpush1.bf16.msra.mxu0 %v1731
    %2408 = vmatprep.subr.bf16.mxu0 %v1728
    %2409 = vmatpush1.bf16.msra.mxu0 %v1727
    %2410 = vmatprep.subr.bf16.mxu0 %v1724
    %2411 = vmatpush1.bf16.msra.mxu0 %v1723
    %2412 = vmatprep.subr.bf16.mxu0 %v1784
    %2413 = vmatpush2.bf16.msra.mxu0 %v1783
    %2414 = vmatprep.subr.bf16.mxu0 %v1780
    %2415 = vmatpush2.bf16.msra.mxu0 %v1779
    %2416 = vmatprep.subr.bf16.mxu0 %v1776
    %2417 = vmatpush2.bf16.msra.mxu0 %v1775
    %2418 = vmatprep.subr.bf16.mxu0 %v1772
    %2419 = vmatpush2.bf16.msra.mxu0 %v1771
    %2420 = vmatprep.subr.bf16.mxu0 %v1768
    %2421 = vmatpush2.bf16.msra.mxu0 %v1767
    %2422 = vmatprep.subr.bf16.mxu0 %v1764
    %2423 = vmatpush2.bf16.msra.mxu0 %v1763
    %2424 = vmatprep.subr.bf16.mxu0 %v1760
    %2425 = vmatpush2.bf16.msra.mxu0 %v1759
    %2426 = vmatprep.subr.bf16.mxu0 %v1756
    %2427 = vmatpush2.bf16.msra.mxu0 %v1755
    %2428 = vmatprep.mubr.bf16.mxu0 %v1224
    %2429 = vmatmul.mubr.bf16.gmra.mxu0 %v1223
    %v2430 = vpop.f32.mrf.mxu0
    %v2431 = vadd.f32 %v2270, %v2430
    %v2432 = vpop.f32.mrf.mxu0
    %v2433 = vadd.f32 %v2272, %v2432
    %v2434 = vpop.f32.mrf.mxu0
    %v2435 = vadd.f32 %v2274, %v2434
    %v2436 = vpop.f32.mrf.mxu0
    %v2437 = vadd.f32 %v2276, %v2436
    %2438 = vmatprep.mubr.bf16.mxu0 %v1228
    %2439 = vmatmul.mubr.bf16.gmra.mxu0 %v1227
    %v2440 = vpop.f32.mrf.mxu0
    %v2441 = vadd.f32 %v2280, %v2440
    %v2442 = vpop.f32.mrf.mxu0
    %v2443 = vadd.f32 %v2282, %v2442
    %v2444 = vpop.f32.mrf.mxu0
    %v2445 = vadd.f32 %v2284, %v2444
    %v2446 = vpop.f32.mrf.mxu0
    %v2447 = vadd.f32 %v2286, %v2446
    %2448 = vmatprep.mubr.bf16.mxu0 %v1232
    %2449 = vmatmul.mubr.bf16.gmra.mxu0 %v1231
    %v2450 = vpop.f32.mrf.mxu0
    %v2451 = vadd.f32 %v2290, %v2450
    %v2452 = vpop.f32.mrf.mxu0
    %v2453 = vadd.f32 %v2292, %v2452
    %v2454 = vpop.f32.mrf.mxu0
    %v2455 = vadd.f32 %v2294, %v2454
    %v2456 = vpop.f32.mrf.mxu0
    %v2457 = vadd.f32 %v2296, %v2456
    %2458 = vmatprep.mubr.bf16.mxu0 %v1236
    %2459 = vmatmul.mubr.bf16.gmra.mxu0 %v1235
    %v2460 = vpop.f32.mrf.mxu0
    %v2461 = vadd.f32 %v2300, %v2460
    %v2462 = vpop.f32.mrf.mxu0
    %v2463 = vadd.f32 %v2302, %v2462
    %v2464 = vpop.f32.mrf.mxu0
    %v2465 = vadd.f32 %v2304, %v2464
    %v2466 = vpop.f32.mrf.mxu0
    %v2467 = vadd.f32 %v2306, %v2466
    %2468 = vmatprep.mubr.bf16.mxu0 %v1240
    %2469 = vmatmul.mubr.bf16.gmra.mxu0 %v1239
    %v2470 = vpop.f32.mrf.mxu0
    %v2471 = vadd.f32 %v2310, %v2470
    %v2472 = vpop.f32.mrf.mxu0
    %v2473 = vadd.f32 %v2312, %v2472
    %v2474 = vpop.f32.mrf.mxu0
    %v2475 = vadd.f32 %v2314, %v2474
    %v2476 = vpop.f32.mrf.mxu0
    %v2477 = vadd.f32 %v2316, %v2476
    %2478 = vmatprep.mubr.bf16.mxu0 %v1244
    %2479 = vmatmul.mubr.bf16.gmra.mxu0 %v1243
    %v2480 = vpop.f32.mrf.mxu0
    %v2481 = vadd.f32 %v2320, %v2480
    %v2482 = vpop.f32.mrf.mxu0
    %v2483 = vadd.f32 %v2322, %v2482
    %v2484 = vpop.f32.mrf.mxu0
    %v2485 = vadd.f32 %v2324, %v2484
    %v2486 = vpop.f32.mrf.mxu0
    %v2487 = vadd.f32 %v2326, %v2486
    %2488 = vmatprep.mubr.bf16.mxu0 %v1248
    %2489 = vmatmul.mubr.bf16.gmra.mxu0 %v1247
    %v2490 = vpop.f32.mrf.mxu0
    %v2491 = vadd.f32 %v2330, %v2490
    %v2492 = vpop.f32.mrf.mxu0
    %v2493 = vadd.f32 %v2332, %v2492
    %v2494 = vpop.f32.mrf.mxu0
    %v2495 = vadd.f32 %v2334, %v2494
    %v2496 = vpop.f32.mrf.mxu0
    %v2497 = vadd.f32 %v2336, %v2496
    %2498 = vmatprep.mubr.bf16.mxu0 %v1252
    %2499 = vmatmul.mubr.bf16.gmra.mxu0 %v1251
    %v2500 = vpop.f32.mrf.mxu0
    %v2501 = vadd.f32 %v2340, %v2500
    %v2502 = vpop.f32.mrf.mxu0
    %v2503 = vadd.f32 %v2342, %v2502
    %v2504 = vpop.f32.mrf.mxu0
    %v2505 = vadd.f32 %v2344, %v2504
    %v2506 = vpop.f32.mrf.mxu0
    %v2507 = vadd.f32 %v2346, %v2506
    %2508 = vmatprep.mubr.bf16.mxu0 %v1256
    %2509 = vmatmul.mubr.bf16.gmra.mxu0 %v1255
    %v2510 = vpop.f32.mrf.mxu0
    %v2511 = vadd.f32 %v2350, %v2510
    %v2512 = vpop.f32.mrf.mxu0
    %v2513 = vadd.f32 %v2352, %v2512
    %v2514 = vpop.f32.mrf.mxu0
    %v2515 = vadd.f32 %v2354, %v2514
    %v2516 = vpop.f32.mrf.mxu0
    %v2517 = vadd.f32 %v2356, %v2516
    %2518 = vmatprep.mubr.bf16.mxu0 %v1260
    %2519 = vmatmul.mubr.bf16.gmra.mxu0 %v1259
    %v2520 = vpop.f32.mrf.mxu0
    %v2521 = vadd.f32 %v2360, %v2520
    %v2522 = vpop.f32.mrf.mxu0
    %v2523 = vadd.f32 %v2362, %v2522
    %v2524 = vpop.f32.mrf.mxu0
    %v2525 = vadd.f32 %v2364, %v2524
    %v2526 = vpop.f32.mrf.mxu0
    %v2527 = vadd.f32 %v2366, %v2526
    %2528 = vmatprep.mubr.bf16.mxu0 %v1264
    %2529 = vmatmul.mubr.bf16.gmra.mxu0 %v1263
    %v2530 = vpop.f32.mrf.mxu0
    %v2531 = vadd.f32 %v2370, %v2530
    %v2532 = vpop.f32.mrf.mxu0
    %v2533 = vadd.f32 %v2372, %v2532
    %v2534 = vpop.f32.mrf.mxu0
    %v2535 = vadd.f32 %v2374, %v2534
    %v2536 = vpop.f32.mrf.mxu0
    %v2537 = vadd.f32 %v2376, %v2536
    %2538 = vmatprep.mubr.bf16.mxu0 %v1268
    %2539 = vmatmul.mubr.bf16.gmra.mxu0 %v1267
    %v2540 = vpop.f32.mrf.mxu0
    %v2541 = vadd.f32 %v2380, %v2540
    %v2542 = vpop.f32.mrf.mxu0
    %v2543 = vadd.f32 %v2382, %v2542
    %v2544 = vpop.f32.mrf.mxu0
    %v2545 = vadd.f32 %v2384, %v2544
    %v2546 = vpop.f32.mrf.mxu0
    %v2547 = vadd.f32 %v2386, %v2546
    %2548 = vmatprep.mubr.bf16.mxu0 %v1272
    %2549 = vmatmul.mubr.bf16.gmra.mxu0 %v1271
    %v2550 = vpop.f32.mrf.mxu0
    %v2551 = vadd.f32 %v2390, %v2550
    %v2552 = vpop.f32.mrf.mxu0
    %v2553 = vadd.f32 %v2392, %v2552
    %v2554 = vpop.f32.mrf.mxu0
    %v2555 = vpop.f32.mrf.mxu0
    %2556 = vdwg.mxu0
    %v2557 = vrcp.pop %v571
    %v2558 = vrcp.pop %v576
    %v2559 = vrcp.pop %v581
    %v2560 = vrcp.pop %v586
    %v2561 = vrcp.pop %v591
    %v2562 = vrcp.pop %v596
    %v2563 = vrcp.pop %v601
    %v2564 = vrcp.pop %v606
    %v2565 = vrcp.pop %v611
    %v2566 = vrcp.pop %v616
    %v2567 = vrcp.pop %v621
    %v2568 = vrcp.pop %v626
    %v2569 = vrcp.pop %v631
    %v2570 = vrcp.pop %v636
    %v2571 = vrcp.pop %v641
    %v2572 = vrcp.pop %v646
    %v2573 = vrcp.pop %v651
    %v2574 = vrcp.pop %v656
    %v2575 = vrcp.pop %v661
    %v2576 = vrcp.pop %v666
    %v2577 = vrcp.pop %v671
    %v2578 = vrcp.pop %v676
    %v2579 = vrcp.pop %v681
    %v2580 = vrcp.pop %v686
    %v2581 = vrcp.pop %v691
    %v2582 = vmul.f32 %v2109, %v2557
    %v2583 = vmul.f32 %v2111, %v2557
    %v2584 = vmul.f32 %v2431, %v2557
    %v2585 = vmul.f32 %v2433, %v2557
    %v2586 = vmul.f32 %v2113, %v2558
    %v2587 = vmul.f32 %v2115, %v2558
    %v2588 = vmul.f32 %v2435, %v2558
    %v2589 = vmul.f32 %v2437, %v2558
    %v2590 = vmul.f32 %v2119, %v2559
    %v2591 = vmul.f32 %v2121, %v2559
    %v2592 = vmul.f32 %v2441, %v2559
    %v2593 = vmul.f32 %v2443, %v2559
    %v2594 = vmul.f32 %v2123, %v2560
    %v2595 = vmul.f32 %v2125, %v2560
    %v2596 = vmul.f32 %v2445, %v2560
    %v2597 = vmul.f32 %v2447, %v2560
    %v2598 = vmul.f32 %v2129, %v2561
    %v2599 = vmul.f32 %v2131, %v2561
    %v2600 = vmul.f32 %v2451, %v2561
    %v2601 = vmul.f32 %v2453, %v2561
    %v2602 = vmul.f32 %v2133, %v2562
    %v2603 = vmul.f32 %v2135, %v2562
    %v2604 = vmul.f32 %v2455, %v2562
    %v2605 = vmul.f32 %v2457, %v2562
    %v2606 = vmul.f32 %v2139, %v2563
    %v2607 = vmul.f32 %v2141, %v2563
    %v2608 = vmul.f32 %v2461, %v2563
    %v2609 = vmul.f32 %v2463, %v2563
    %v2610 = vmul.f32 %v2143, %v2564
    %v2611 = vmul.f32 %v2145, %v2564
    %v2612 = vmul.f32 %v2465, %v2564
    %v2613 = vmul.f32 %v2467, %v2564
    %v2614 = vmul.f32 %v2149, %v2565
    %v2615 = vmul.f32 %v2151, %v2565
    %v2616 = vmul.f32 %v2471, %v2565
    %v2617 = vmul.f32 %v2473, %v2565
    %v2618 = vmul.f32 %v2153, %v2566
    %v2619 = vmul.f32 %v2155, %v2566
    %v2620 = vmul.f32 %v2475, %v2566
    %v2621 = vmul.f32 %v2477, %v2566
    %v2622 = vmul.f32 %v2159, %v2567
    %v2623 = vmul.f32 %v2161, %v2567
    %v2624 = vmul.f32 %v2481, %v2567
    %v2625 = vmul.f32 %v2483, %v2567
    %v2626 = vmul.f32 %v2163, %v2568
    %v2627 = vmul.f32 %v2165, %v2568
    %v2628 = vmul.f32 %v2485, %v2568
    %v2629 = vmul.f32 %v2487, %v2568
    %v2630 = vmul.f32 %v2169, %v2569
    %v2631 = vmul.f32 %v2171, %v2569
    %v2632 = vmul.f32 %v2491, %v2569
    %v2633 = vmul.f32 %v2493, %v2569
    %v2634 = vmul.f32 %v2173, %v2570
    %v2635 = vmul.f32 %v2175, %v2570
    %v2636 = vmul.f32 %v2495, %v2570
    %v2637 = vmul.f32 %v2497, %v2570
    %v2638 = vmul.f32 %v2179, %v2571
    %v2639 = vmul.f32 %v2181, %v2571
    %v2640 = vmul.f32 %v2501, %v2571
    %v2641 = vmul.f32 %v2503, %v2571
    %v2642 = vmul.f32 %v2183, %v2572
    %v2643 = vmul.f32 %v2185, %v2572
    %v2644 = vmul.f32 %v2505, %v2572
    %v2645 = vmul.f32 %v2507, %v2572
    %v2646 = vmul.f32 %v2189, %v2573
    %v2647 = vmul.f32 %v2191, %v2573
    %v2648 = vmul.f32 %v2511, %v2573
    %v2649 = vmul.f32 %v2513, %v2573
    %v2650 = vmul.f32 %v2193, %v2574
    %v2651 = vmul.f32 %v2195, %v2574
    %v2652 = vmul.f32 %v2515, %v2574
    %v2653 = vmul.f32 %v2517, %v2574
    %v2654 = vmul.f32 %v2199, %v2575
    %v2655 = vmul.f32 %v2201, %v2575
    %v2656 = vmul.f32 %v2521, %v2575
    %v2657 = vmul.f32 %v2523, %v2575
    %v2658 = vmul.f32 %v2203, %v2576
    %v2659 = vmul.f32 %v2205, %v2576
    %v2660 = vmul.f32 %v2525, %v2576
    %v2661 = vmul.f32 %v2527, %v2576
    %v2662 = vmul.f32 %v2209, %v2577
    %v2663 = vmul.f32 %v2211, %v2577
    %v2664 = vmul.f32 %v2531, %v2577
    %v2665 = vmul.f32 %v2533, %v2577
    %v2666 = vmul.f32 %v2213, %v2578
    %v2667 = vmul.f32 %v2215, %v2578
    %v2668 = vmul.f32 %v2535, %v2578
    %v2669 = vmul.f32 %v2537, %v2578
    %v2670 = vmul.f32 %v2219, %v2579
    %v2671 = vmul.f32 %v2221, %v2579
    %v2672 = vmul.f32 %v2541, %v2579
    %v2673 = vmul.f32 %v2543, %v2579
    %v2674 = vmul.f32 %v2223, %v2580
    %v2675 = vmul.f32 %v2225, %v2580
    %v2676 = vmul.f32 %v2545, %v2580
    %v2677 = vmul.f32 %v2547, %v2580
    %v2678 = vmul.f32 %v2229, %v2581
    %v2679 = vmul.f32 %v2231, %v2581
    %v2680 = vmul.f32 %v2551, %v2581
    %v2681 = vmul.f32 %v2553, %v2581
    %2682 = vst [vmem:[#allocation7] sm:$0xff] %v2582
    %2683 = vst [vmem:[#allocation7 + $0x8] sm:$0xff] %v2583
    %2684 = vst [vmem:[#allocation7 + $0x10] sm:$0xff] %v2584
    %2685 = vst [vmem:[#allocation7 + $0x18] sm:$0xff] %v2585
    %2686 = vst [vmem:[#allocation7 + $0x20] sm:$0xff] %v2586
    %2687 = vst [vmem:[#allocation7 + $0x28] sm:$0xff] %v2587
    %2688 = vst [vmem:[#allocation7 + $0x30] sm:$0xff] %v2588
    %2689 = vst [vmem:[#allocation7 + $0x38] sm:$0xff] %v2589
    %2690 = vst [vmem:[#allocation7 + $0x40] sm:$0xff] %v2590
    %2691 = vst [vmem:[#allocation7 + $0x48] sm:$0xff] %v2591
    %2692 = vst [vmem:[#allocation7 + $0x50] sm:$0xff] %v2592
    %2693 = vst [vmem:[#allocation7 + $0x58] sm:$0xff] %v2593
    %2694 = vst [vmem:[#allocation7 + $0x60] sm:$0xff] %v2594
    %2695 = vst [vmem:[#allocation7 + $0x68] sm:$0xff] %v2595
    %2696 = vst [vmem:[#allocation7 + $0x70] sm:$0xff] %v2596
    %2697 = vst [vmem:[#allocation7 + $0x78] sm:$0xff] %v2597
    %2698 = vst [vmem:[#allocation7 + $0x80] sm:$0xff] %v2598
    %2699 = vst [vmem:[#allocation7 + $0x88] sm:$0xff] %v2599
    %2700 = vst [vmem:[#allocation7 + $0x90] sm:$0xff] %v2600
    %2701 = vst [vmem:[#allocation7 + $0x98] sm:$0xff] %v2601
    %2702 = vst [vmem:[#allocation7 + $0xa0] sm:$0xff] %v2602
    %2703 = vst [vmem:[#allocation7 + $0xa8] sm:$0xff] %v2603
    %2704 = vst [vmem:[#allocation7 + $0xb0] sm:$0xff] %v2604
    %2705 = vst [vmem:[#allocation7 + $0xb8] sm:$0xff] %v2605
    %2706 = vst [vmem:[#allocation7 + $0xc0] sm:$0xff] %v2606
    %2707 = vst [vmem:[#allocation7 + $0xc8] sm:$0xff] %v2607
    %2708 = vst [vmem:[#allocation7 + $0xd0] sm:$0xff] %v2608
    %2709 = vst [vmem:[#allocation7 + $0xd8] sm:$0xff] %v2609
    %2710 = vst [vmem:[#allocation7 + $0xe0] sm:$0xff] %v2610
    %2711 = vst [vmem:[#allocation7 + $0xe8] sm:$0xff] %v2611
    %2712 = vst [vmem:[#allocation7 + $0xf0] sm:$0xff] %v2612
    %2713 = vst [vmem:[#allocation7 + $0xf8] sm:$0xff] %v2613
    %2714 = vst [vmem:[#allocation7 + $0x100] sm:$0xff] %v2614
    %2715 = vst [vmem:[#allocation7 + $0x108] sm:$0xff] %v2615
    %2716 = vst [vmem:[#allocation7 + $0x110] sm:$0xff] %v2616
    %2717 = vst [vmem:[#allocation7 + $0x118] sm:$0xff] %v2617
    %2718 = vst [vmem:[#allocation7 + $0x120] sm:$0xff] %v2618
    %2719 = vst [vmem:[#allocation7 + $0x128] sm:$0xff] %v2619
    %2720 = vst [vmem:[#allocation7 + $0x130] sm:$0xff] %v2620
    %2721 = vst [vmem:[#allocation7 + $0x138] sm:$0xff] %v2621
    %2722 = vst [vmem:[#allocation7 + $0x140] sm:$0xff] %v2622
    %2723 = vst [vmem:[#allocation7 + $0x148] sm:$0xff] %v2623
    %2724 = vst [vmem:[#allocation7 + $0x150] sm:$0xff] %v2624
    %2725 = vst [vmem:[#allocation7 + $0x158] sm:$0xff] %v2625
    %2726 = vst [vmem:[#allocation7 + $0x160] sm:$0xff] %v2626
    %2727 = vst [vmem:[#allocation7 + $0x168] sm:$0xff] %v2627
    %2728 = vst [vmem:[#allocation7 + $0x170] sm:$0xff] %v2628
    %2729 = vst [vmem:[#allocation7 + $0x178] sm:$0xff] %v2629
    %2730 = vst [vmem:[#allocation7 + $0x180] sm:$0xff] %v2630
    %2731 = vst [vmem:[#allocation7 + $0x188] sm:$0xff] %v2631
    %2732 = vst [vmem:[#allocation7 + $0x190] sm:$0xff] %v2632
    %2733 = vst [vmem:[#allocation7 + $0x198] sm:$0xff] %v2633
    %2734 = vst [vmem:[#allocation7 + $0x1a0] sm:$0xff] %v2634
    %2735 = vst [vmem:[#allocation7 + $0x1a8] sm:$0xff] %v2635
    %2736 = vst [vmem:[#allocation7 + $0x1b0] sm:$0xff] %v2636
    %2737 = vst [vmem:[#allocation7 + $0x1b8] sm:$0xff] %v2637
    %2738 = vst [vmem:[#allocation7 + $0x1c0] sm:$0xff] %v2638
    %2739 = vst [vmem:[#allocation7 + $0x1c8] sm:$0xff] %v2639
    %2740 = vst [vmem:[#allocation7 + $0x1d0] sm:$0xff] %v2640
    %2741 = vst [vmem:[#allocation7 + $0x1d8] sm:$0xff] %v2641
    %2742 = vst [vmem:[#allocation7 + $0x1e0] sm:$0xff] %v2642
    %2743 = vst [vmem:[#allocation7 + $0x1e8] sm:$0xff] %v2643
    %2744 = vst [vmem:[#allocation7 + $0x1f0] sm:$0xff] %v2644
    %2745 = vst [vmem:[#allocation7 + $0x1f8] sm:$0xff] %v2645
    %2746 = vst [vmem:[#allocation7 + $0x200] sm:$0xff] %v2646
    %2747 = vst [vmem:[#allocation7 + $0x208] sm:$0xff] %v2647
    %2748 = vst [vmem:[#allocation7 + $0x210] sm:$0xff] %v2648
    %2749 = vst [vmem:[#allocation7 + $0x218] sm:$0xff] %v2649
    %2750 = vst [vmem:[#allocation7 + $0x220] sm:$0xff] %v2650
    %2751 = vst [vmem:[#allocation7 + $0x228] sm:$0xff] %v2651
    %2752 = vst [vmem:[#allocation7 + $0x230] sm:$0xff] %v2652
    %2753 = vst [vmem:[#allocation7 + $0x238] sm:$0xff] %v2653
    %2754 = vst [vmem:[#allocation7 + $0x240] sm:$0xff] %v2654
    %2755 = vst [vmem:[#allocation7 + $0x248] sm:$0xff] %v2655
    %2756 = vst [vmem:[#allocation7 + $0x250] sm:$0xff] %v2656
    %2757 = vst [vmem:[#allocation7 + $0x258] sm:$0xff] %v2657
    %2758 = vst [vmem:[#allocation7 + $0x260] sm:$0xff] %v2658
    %2759 = vst [vmem:[#allocation7 + $0x268] sm:$0xff] %v2659
    %2760 = vst [vmem:[#allocation7 + $0x270] sm:$0xff] %v2660
    %2761 = vst [vmem:[#allocation7 + $0x278] sm:$0xff] %v2661
    %2762 = vst [vmem:[#allocation7 + $0x280] sm:$0xff] %v2662
    %2763 = vst [vmem:[#allocation7 + $0x288] sm:$0xff] %v2663
    %2764 = vst [vmem:[#allocation7 + $0x290] sm:$0xff] %v2664
    %2765 = vst [vmem:[#allocation7 + $0x298] sm:$0xff] %v2665
    %2766 = vst [vmem:[#allocation7 + $0x2a0] sm:$0xff] %v2666
    %2767 = vst [vmem:[#allocation7 + $0x2a8] sm:$0xff] %v2667
    %2768 = vst [vmem:[#allocation7 + $0x2b0] sm:$0xff] %v2668
    %2769 = vst [vmem:[#allocation7 + $0x2b8] sm:$0xff] %v2669
    %2770 = vst [vmem:[#allocation7 + $0x2c0] sm:$0xff] %v2670
    %2771 = vst [vmem:[#allocation7 + $0x2c8] sm:$0xff] %v2671
    %2772 = vst [vmem:[#allocation7 + $0x2d0] sm:$0xff] %v2672
    %2773 = vst [vmem:[#allocation7 + $0x2d8] sm:$0xff] %v2673
    %2774 = vst [vmem:[#allocation7 + $0x2e0] sm:$0xff] %v2674
    %2775 = vst [vmem:[#allocation7 + $0x2e8] sm:$0xff] %v2675
    %2776 = vst [vmem:[#allocation7 + $0x2f0] sm:$0xff] %v2676
    %2777 = vst [vmem:[#allocation7 + $0x2f8] sm:$0xff] %v2677
    %2778 = vst [vmem:[#allocation7 + $0x300] sm:$0xff] %v2678
    %2779 = vst [vmem:[#allocation7 + $0x308] sm:$0xff] %v2679
    %2780 = vst [vmem:[#allocation7 + $0x310] sm:$0xff] %v2680
    %2781 = vst [vmem:[#allocation7 + $0x318] sm:$0xff] %v2681
    // Predicated region
    $region18: #{tpu_custom_call.1} parent=1 // pred_check
      _
    $region19: #{tpu_custom_call.1} parent=1 // pred_check_branch
      %2783 = sbr.rel (0) target = $region21
    $region20: #{tpu_custom_call.1} parent=1 // pred_region
      %s2785 = ssub.s32 12800, 12800
      %2786 = vsyncadd [#allocation4], %s2785
      %s2787 = sshll.u32 [#allocation7], 4
      %s2788 = int_to_ptr.vmem [resolvable:$true] %s2787
      %2793 = dma.vmem_to_hbm [thread:$0]  %s2788, 12800, %s2, [#allocation4], 512, 512, 32
    $region21: #{tpu_custom_call.1} parent=1 // pred_fallthru
      _
    // Predicated region
    $region22: #{tpu_custom_call.1} parent=1 // pred_check
      _
    $region23: #{tpu_custom_call.1} parent=1 // pred_check_branch
      %2795 = sbr.rel (0) target = $region25
    $region24: #{tpu_custom_call.1} parent=1 // pred_region
      _
    $region25: #{tpu_custom_call.1} parent=1 // pred_fallthru
      _
    // Predicated region
    $region26: #{tpu_custom_call.1} parent=1 // pred_check
      _
    $region27: #{tpu_custom_call.1} parent=1 // pred_check_branch
      %2797 = sbr.rel (0) target = $region29
    $region28: #{tpu_custom_call.1} parent=1 // pred_region
      %2798 = dma.done [#allocation4], 12800
    $region29: #{tpu_custom_call.1} parent=1 // pred_fallthru
      _
    // Predicated region
    $region30: #{tpu_custom_call.1} parent=1 // pred_check
      _
    $region31: #{tpu_custom_call.1} parent=1 // pred_check_branch
      %2800 = sbr.rel (0) target = $region33
    $region32: #{tpu_custom_call.1} parent=1 // pred_region
      _
    $region33: #{tpu_custom_call.1} parent=1 // pred_fallthru
      _
    %2801 = vsyncpa [#allocation3], 1
    %2802 = vsyncpa [#allocation6], 1
    %2803 = vsyncpa [#allocation4], 1

</llo_original>
